<compile_context>
chip_gen: v5e
topology: v5e:2x2
jax: 0.10.0
libtpu: 0.0.40
codegen_flags: <defaults>
</compile_context>

<pallas_src>
import functools

import jax
import jax.numpy as jnp
from jax.experimental import pallas as pl
from jax.experimental.pallas import tpu as pltpu


def _round_up(x, m):
    return ((x + m - 1) // m) * m


# ---------------------------------------------------------------------------
# Pass 1: accumulate per-path sums over N of tanh(Z_p @ W1 + b1)  ->  (P, H)
# ---------------------------------------------------------------------------
def _score_kernel(n_total, tile_n, num_paths, need_mask, matmul_dtype, *refs):
    # refs = (z_0, ..., z_{P-1}, w1, b1, acc)
    #   z_p : (TN, D)  current N-tile of metapath p
    #   w1  : (D, H)   first Linear weight (already transposed)
    #   b1  : (1, H)   first Linear bias
    #   acc : (P, H)   resident accumulator for this split (leading dim squeezed)
    z_refs = refs[:num_paths]
    w1_ref = refs[num_paths]
    b1_ref = refs[num_paths + 1]
    acc_ref = refs[num_paths + 2]

    @pl.when(pl.program_id(1) == 0)
    def _():
        acc_ref[...] = jnp.zeros_like(acc_ref)

    # Flatten the path axis into the matmul M dimension: one wide MXU matmul
    # (P*TN, D) @ (D, H) instead of P small ones (leading-dim merge is layout no-op).
    zcat = jnp.concatenate([r[...] for r in z_refs], axis=0)          # (P*TN, D)
    hid = jnp.dot(zcat.astype(matmul_dtype),
                  w1_ref[...].astype(matmul_dtype),
                  preferred_element_type=jnp.float32) + b1_ref[...]   # (P*TN, H) f32
    hid = jnp.tanh(hid)
    hid = hid.reshape(num_paths, tile_n, hid.shape[-1])               # (P, TN, H)

    if need_mask:
        # Logical N-tile index across the (split, tile) grid; zero out rows >= N
        # (covers both the ragged last tile and any duplicated clamped tile).
        t = pl.program_id(0) * pl.num_programs(1) + pl.program_id(1)
        rows = t * tile_n + jax.lax.broadcasted_iota(jnp.int32, (tile_n, 1), 0)
        hid = jnp.where((rows < n_total)[None], hid, 0.0)

    acc_ref[...] += jnp.sum(hid, axis=1)                              # (P, H)


# ---------------------------------------------------------------------------
# Pass 2: out_tile = sum_p beta[p] * Z_p[tile]      (beta scalars from SMEM)
# ---------------------------------------------------------------------------
def _weighted_sum_kernel(num_paths, *refs):
    # refs = (beta (P,) in SMEM, z_0, ..., z_{P-1} (TN, D), out (TN, D))
    beta_ref = refs[0]
    z_refs = refs[1:1 + num_paths]
    o_ref = refs[1 + num_paths]

    acc = beta_ref[0] * z_refs[0][...].astype(jnp.float32)
    for pi in range(1, num_paths):
        acc = acc + beta_ref[pi] * z_refs[pi][...].astype(jnp.float32)
    o_ref[...] = acc.astype(o_ref.dtype)


# ---------------------------------------------------------------------------
# Wrapper: SemanticAttention.forward
# ---------------------------------------------------------------------------
def semantic_attention(z_list, w1, b1, w2, *, tile_n=1024, num_splits=2,
                       score_matmul_dtype=jnp.float32):
    """z_list: list of P arrays (N, D); w1: (D, H); b1: (H,); w2: (H, 1) -> (N, D)."""
    if len(z_list) == 0:
        return None

    num_paths = len(z_list)
    n, d = z_list[0].shape
    h = w1.shape[1]

    # Tile rows: multiple of 8 (sublane), never larger than N rounded up to 8.
    tile_n_eff = min(_round_up(tile_n, 8), _round_up(n, 8))
    n_blocks = pl.cdiv(n, tile_n_eff)

    w1_f = w1.astype(jnp.float32)
    b1_row = b1.reshape(1, h).astype(jnp.float32)
    w2_f = w2.astype(jnp.float32)

    # ---- Pass 1: per-path hidden sums over N -------------------------------
    splits = max(1, min(num_splits, n_blocks))         # 2-way TC split (v7x); no-op on 1-TC
    tiles_per_split = pl.cdiv(n_blocks, splits)
    need_clamp = splits * tiles_per_split > n_blocks
    need_mask = need_clamp or (n % tile_n_eff != 0)

    if need_clamp:
        def z_map(c, i):
            return (jnp.minimum(c * tiles_per_split + i, n_blocks - 1), 0)
    else:
        def z_map(c, i):
            return (c * tiles_per_split + i, 0)

    kernel1 = functools.partial(_score_kernel, n, tile_n_eff, num_paths,
                                need_mask, score_matmul_dtype)

    hidden_parts = pl.pallas_call(
        kernel1,
        out_shape=jax.ShapeDtypeStruct((splits, num_paths, h), jnp.float32),
        grid=(splits, tiles_per_split),
        in_specs=[pl.BlockSpec((tile_n_eff, d), z_map) for _ in range(num_paths)]
                + [pl.BlockSpec((d, h), lambda c, i: (0, 0)),
                   pl.BlockSpec((1, h), lambda c, i: (0, 0))],
        out_specs=pl.BlockSpec((None, num_paths, h), lambda c, i: (c, 0, 0)),
        compiler_params=pltpu.CompilerParams(
            dimension_semantics=("parallel", "arbitrary")),
    )(*z_list, w1_f, b1_row)

    hidden_sums = jnp.sum(hidden_parts, axis=0)                        # (P, H)
    # score_p = mean_N( tanh(Z_p W1 + b1) @ w2 ) == (1/N) * hidden_sums @ w2
    scores = jnp.squeeze(hidden_sums @ w2_f, axis=-1) / n              # (P,)
    beta = jax.nn.softmax(scores).astype(jnp.float32)                  # (P,)

    # ---- Pass 2: beta-weighted sum over paths, tiled/parallel over N -------
    kernel2 = functools.partial(_weighted_sum_kernel, num_paths)
    out = pl.pallas_call(
        kernel2,
        out_shape=jax.ShapeDtypeStruct((n, d), jnp.float32),
        grid=(n_blocks,),
        in_specs=[pl.BlockSpec(memory_space=pltpu.MemorySpace.SMEM)]   # beta (P,)
                + [pl.BlockSpec((tile_n_eff, d), lambda i: (i, 0))
                   for _ in range(num_paths)],
        out_specs=pl.BlockSpec((tile_n_eff, d), lambda i: (i, 0)),
        compiler_params=pltpu.CompilerParams(
            dimension_semantics=("parallel",)),
    )(beta, *z_list)
    return out


# ---------------------------------------------------------------------------
# Pure-JAX reference (mirrors the PyTorch forward)
# ---------------------------------------------------------------------------
def reference_semantic_attention(z_list, w1, b1, w2):
    if len(z_list) == 0:
        return None
    z = jnp.stack(z_list, axis=1)                                # (N, P, D)
    w = jnp.mean(jnp.tanh(z @ w1 + b1) @ w2, axis=0)             # (P, 1)
    beta = jax.nn.softmax(w, axis=0)                             # (P, 1)
    return jnp.sum(beta[None, :, :] * z, axis=1)                 # (N, D)


if __name__ == "__main__":
    key = jax.random.PRNGKey(0)
    N = 1024       # nodes (exercises multi-tile grid + 2-way pass-1 split)
    D = 64         # per-metapath embedding dim (in_size)
    H = 128        # semantic-attention hidden dim (PyTorch default hidden_size=128)
    P = 3          # number of metapaths

    keys = jax.random.split(key, P + 3)
    z_list = [jax.random.normal(keys[i], (N, D), dtype=jnp.float32) for i in range(P)]
    w1 = 0.1 * jax.random.normal(keys[P], (D, H), dtype=jnp.float32)
    b1 = 0.01 * jax.random.normal(keys[P + 1], (H,), dtype=jnp.float32)
    w2 = 0.1 * jax.random.normal(keys[P + 2], (H, 1), dtype=jnp.float32)

    fwd = jax.jit(functools.partial(semantic_attention, tile_n=256, num_splits=2))
    out = fwd(z_list, w1, b1, w2)
    out = jax.block_until_ready(out)

    ref = reference_semantic_attention(z_list, w1, b1, w2)
    assert out.shape == (N, D)
    assert jnp.allclose(out, ref, atol=1e-4, rtol=1e-4), \
        f"max abs err = {jnp.max(jnp.abs(out - ref))}"

    print("KERNEL_OK")
</pallas_src>

<mosaic_0001>
module attributes {stable_mosaic.version = 11 : i64} {
  func.func @_score_kernel(%arg0: i32, %arg1: i32, %arg2: memref<256x64xf32, #tpu.memory_space<vmem>>, %arg3: memref<256x64xf32, #tpu.memory_space<vmem>>, %arg4: memref<256x64xf32, #tpu.memory_space<vmem>>, %arg5: memref<64x128xf32, #tpu.memory_space<vmem>>, %arg6: memref<1x128xf32, #tpu.memory_space<vmem>>, %arg7: memref<1x3x128xf32, #tpu.memory_space<vmem>>) attributes {dimension_semantics = [#tpu.dimension_semantics<parallel>, #tpu.dimension_semantics<arbitrary>], iteration_bounds = array<i64: 2, 2>, scalar_prefetch = 0 : i64, scratch_operands = 0 : i64, tpu.core_type = #tpu.core_type<tc>, window_params = [{transform_indices = @transform_0, window_bounds = array<i64: 256, 64>}, {transform_indices = @transform_1, window_bounds = array<i64: 256, 64>}, {transform_indices = @transform_2, window_bounds = array<i64: 256, 64>}, {pipeline_mode = #tpu.pipeline_mode<synchronous>, transform_indices = @transform_3, window_bounds = array<i64: 64, 128>}, {pipeline_mode = #tpu.pipeline_mode<synchronous>, transform_indices = @transform_4, window_bounds = array<i64: 1, 128>}, {transform_indices = @transform_5, window_bounds = array<i64: 1, 3, 128>}]} {
    %c0_i32 = arith.constant 0 : i32
    %0 = arith.cmpi eq, %arg1, %c0_i32 : i32
    %1 = arith.extui %0 : i1 to i32
    %c0_i32_0 = arith.constant 0 : i32
    %2 = arith.cmpi ne, %1, %c0_i32_0 : i32
    scf.if %2 {
      %cst_17 = arith.constant 0.000000e+00 : f32
      %21 = vector.broadcast %cst_17 : f32 to vector<3x128xf32>
      %c0_18 = arith.constant 0 : index
      %c0_19 = arith.constant 0 : index
      %c0_20 = arith.constant 0 : index
      %22 = vector.load %arg7[%c0_18, %c0_19, %c0_20] : memref<1x3x128xf32, #tpu.memory_space<vmem>>, vector<1x3x128xf32>
      %23 = vector.shape_cast %22 : vector<1x3x128xf32> to vector<3x128xf32>
      %24 = vector.shape_cast %21 : vector<3x128xf32> to vector<1x3x128xf32>
      tpu.vector_store %arg7[%c0_18, %c0_19, %c0_20], %24 {strides = array<i32>} : memref<1x3x128xf32, #tpu.memory_space<vmem>>, vector<1x3x128xf32>,
    } else {
    }
    %c0 = arith.constant 0 : index
    %c0_1 = arith.constant 0 : index
    %3 = vector.load %arg2[%c0, %c0_1] : memref<256x64xf32, #tpu.memory_space<vmem>>, vector<256x64xf32>
    %c0_2 = arith.constant 0 : index
    %c0_3 = arith.constant 0 : index
    %4 = vector.load %arg3[%c0_2, %c0_3] : memref<256x64xf32, #tpu.memory_space<vmem>>, vector<256x64xf32>
    %c0_4 = arith.constant 0 : index
    %c0_5 = arith.constant 0 : index
    %5 = vector.load %arg4[%c0_4, %c0_5] : memref<256x64xf32, #tpu.memory_space<vmem>>, vector<256x64xf32>
    %6 = tpu.concatenate %3, %4, %5 in 0 : vector<256x64xf32>, vector<256x64xf32>, vector<256x64xf32> -> vector<768x64xf32>
    %c0_6 = arith.constant 0 : index
    %c0_7 = arith.constant 0 : index
    %7 = vector.load %arg5[%c0_6, %c0_7] : memref<64x128xf32, #tpu.memory_space<vmem>>, vector<64x128xf32>
    %cst = arith.constant dense<0.000000e+00> : vector<768x128xf32>
    %8 = tpu.matmul %6, %7, %cst {dimension_numbers = #tpu.dot_dimension_numbers<[1], [0], [0], [1], [0, 0, 1, 1], [], []>} : vector<768x64xf32>, vector<64x128xf32>, vector<768x128xf32> -> vector<768x128xf32>
    %c0_8 = arith.constant 0 : index
    %c0_9 = arith.constant 0 : index
    %9 = vector.load %arg6[%c0_8, %c0_9] : memref<1x128xf32, #tpu.memory_space<vmem>>, vector<1x128xf32>
    %10 = vector.broadcast %9 : vector<1x128xf32> to vector<768x128xf32>
    %11 = arith.addf %8, %10 : vector<768x128xf32>
    %12 = math.tanh %11 : vector<768x128xf32>
    %13 = vector.shape_cast %12 : vector<768x128xf32> to vector<3x256x128xf32>
    %c0_10 = arith.constant 0 : index
    %c0_11 = arith.constant 0 : index
    %c0_12 = arith.constant 0 : index
    %14 = vector.load %arg7[%c0_10, %c0_11, %c0_12] : memref<1x3x128xf32, #tpu.memory_space<vmem>>, vector<1x3x128xf32>
    %15 = vector.shape_cast %14 : vector<1x3x128xf32> to vector<3x128xf32>
    %cst_13 = arith.constant dense<0.000000e+00> : vector<3x128xf32>
    %16 = vector.multi_reduction <add>, %13, %cst_13 [1] : vector<3x256x128xf32> to vector<3x128xf32>
    %17 = arith.addf %15, %16 : vector<3x128xf32>
    %c0_14 = arith.constant 0 : index
    %c0_15 = arith.constant 0 : index
    %c0_16 = arith.constant 0 : index
    %18 = vector.load %arg7[%c0_14, %c0_15, %c0_16] : memref<1x3x128xf32, #tpu.memory_space<vmem>>, vector<1x3x128xf32>
    %19 = vector.shape_cast %18 : vector<1x3x128xf32> to vector<3x128xf32>
    %20 = vector.shape_cast %17 : vector<3x128xf32> to vector<1x3x128xf32>
    tpu.vector_store %arg7[%c0_14, %c0_15, %c0_16], %20 {strides = array<i32>} : memref<1x3x128xf32, #tpu.memory_space<vmem>>, vector<1x3x128xf32>,
    return
  }
  func.func @transform_0(%arg0: i32, %arg1: i32) -> (i32, i32) {
    %c2_i32 = arith.constant 2 : i32
    %0 = arith.muli %arg0, %c2_i32 : i32
    %1 = arith.addi %0, %arg1 : i32
    %c0_i32 = arith.constant 0 : i32
    %c0_i32_0 = arith.constant 0 : i32
    return %1, %c0_i32 : i32, i32
  }
  func.func @transform_1(%arg0: i32, %arg1: i32) -> (i32, i32) {
    %c2_i32 = arith.constant 2 : i32
    %0 = arith.muli %arg0, %c2_i32 : i32
    %1 = arith.addi %0, %arg1 : i32
    %c0_i32 = arith.constant 0 : i32
    %c0_i32_0 = arith.constant 0 : i32
    return %1, %c0_i32 : i32, i32
  }
  func.func @transform_2(%arg0: i32, %arg1: i32) -> (i32, i32) {
    %c2_i32 = arith.constant 2 : i32
    %0 = arith.muli %arg0, %c2_i32 : i32
    %1 = arith.addi %0, %arg1 : i32
    %c0_i32 = arith.constant 0 : i32
    %c0_i32_0 = arith.constant 0 : i32
    return %1, %c0_i32 : i32, i32
  }
  func.func @transform_3(%arg0: i32, %arg1: i32) -> (i32, i32) {
    %c0_i32 = arith.constant 0 : i32
    %c0_i32_0 = arith.constant 0 : i32
    %c0_i32_1 = arith.constant 0 : i32
    return %c0_i32, %c0_i32_0 : i32, i32
  }
  func.func @transform_4(%arg0: i32, %arg1: i32) -> (i32, i32) {
    %c0_i32 = arith.constant 0 : i32
    %c0_i32_0 = arith.constant 0 : i32
    %c0_i32_1 = arith.constant 0 : i32
    return %c0_i32, %c0_i32_0 : i32, i32
  }
  func.func @transform_5(%arg0: i32, %arg1: i32) -> (i32, i32, i32) {
    %c0_i32 = arith.constant 0 : i32
    %c0_i32_0 = arith.constant 0 : i32
    %c0_i32_1 = arith.constant 0 : i32
    return %arg0, %c0_i32, %c0_i32_0 : i32, i32, i32
  }
}

module attributes {stable_mosaic.version = 11 : i64} {
  func.func @_weighted_sum_kernel(%arg0: i32, %arg1: memref<3xf32, #tpu.memory_space<smem>>, %arg2: memref<256x64xf32, #tpu.memory_space<vmem>>, %arg3: memref<256x64xf32, #tpu.memory_space<vmem>>, %arg4: memref<256x64xf32, #tpu.memory_space<vmem>>, %arg5: memref<256x64xf32, #tpu.memory_space<vmem>>) attributes {dimension_semantics = [#tpu.dimension_semantics<parallel>], iteration_bounds = array<i64: 4>, scalar_prefetch = 0 : i64, scratch_operands = 0 : i64, tpu.core_type = #tpu.core_type<tc>, window_params = [{transform_indices = @transform_0, window_bounds = array<i64: 3>}, {transform_indices = @transform_1, window_bounds = array<i64: 256, 64>}, {transform_indices = @transform_2, window_bounds = array<i64: 256, 64>}, {transform_indices = @transform_3, window_bounds = array<i64: 256, 64>}, {transform_indices = @transform_4, window_bounds = array<i64: 256, 64>}]} {
    %c0 = arith.constant 0 : index
    %0 = memref.load %arg1[%c0] : memref<3xf32, #tpu.memory_space<smem>>
    %c0_0 = arith.constant 0 : index
    %c0_1 = arith.constant 0 : index
    %1 = vector.load %arg2[%c0_0, %c0_1] : memref<256x64xf32, #tpu.memory_space<vmem>>, vector<256x64xf32>
    %2 = vector.broadcast %0 : f32 to vector<256x64xf32>
    %3 = arith.mulf %2, %1 : vector<256x64xf32>
    %c1 = arith.constant 1 : index
    %4 = memref.load %arg1[%c1] : memref<3xf32, #tpu.memory_space<smem>>
    %c0_2 = arith.constant 0 : index
    %c0_3 = arith.constant 0 : index
    %5 = vector.load %arg3[%c0_2, %c0_3] : memref<256x64xf32, #tpu.memory_space<vmem>>, vector<256x64xf32>
    %6 = vector.broadcast %4 : f32 to vector<256x64xf32>
    %7 = arith.mulf %6, %5 : vector<256x64xf32>
    %8 = arith.addf %3, %7 : vector<256x64xf32>
    %c2 = arith.constant 2 : index
    %9 = memref.load %arg1[%c2] : memref<3xf32, #tpu.memory_space<smem>>
    %c0_4 = arith.constant 0 : index
    %c0_5 = arith.constant 0 : index
    %10 = vector.load %arg4[%c0_4, %c0_5] : memref<256x64xf32, #tpu.memory_space<vmem>>, vector<256x64xf32>
    %11 = vector.broadcast %9 : f32 to vector<256x64xf32>
    %12 = arith.mulf %11, %10 : vector<256x64xf32>
    %13 = arith.addf %8, %12 : vector<256x64xf32>
    %c0_6 = arith.constant 0 : index
    %c0_7 = arith.constant 0 : index
    %14 = vector.load %arg5[%c0_6, %c0_7] : memref<256x64xf32, #tpu.memory_space<vmem>>, vector<256x64xf32>
    tpu.vector_store %arg5[%c0_6, %c0_7], %13 {strides = array<i32>} : memref<256x64xf32, #tpu.memory_space<vmem>>, vector<256x64xf32>,
    return
  }
  func.func @transform_0(%arg0: i32) -> i32 {
    %c0_i32 = arith.constant 0 : i32
    %c0_i32_0 = arith.constant 0 : i32
    return %c0_i32 : i32
  }
  func.func @transform_1(%arg0: i32) -> (i32, i32) {
    %c0_i32 = arith.constant 0 : i32
    %c0_i32_0 = arith.constant 0 : i32
    return %arg0, %c0_i32 : i32, i32
  }
  func.func @transform_2(%arg0: i32) -> (i32, i32) {
    %c0_i32 = arith.constant 0 : i32
    %c0_i32_0 = arith.constant 0 : i32
    return %arg0, %c0_i32 : i32, i32
  }
  func.func @transform_3(%arg0: i32) -> (i32, i32) {
    %c0_i32 = arith.constant 0 : i32
    %c0_i32_0 = arith.constant 0 : i32
    return %arg0, %c0_i32 : i32, i32
  }
  func.func @transform_4(%arg0: i32) -> (i32, i32) {
    %c0_i32 = arith.constant 0 : i32
    %c0_i32_0 = arith.constant 0 : i32
    return %arg0, %c0_i32 : i32, i32
  }
}

</mosaic_0001>

<llo_original>
// kernel: semantic_attention.3
$region0: #{semantic_attention.3}
  #allocation0 [shape = 'u32[]', space=smem, size = 0x4, offset = 0x4, fixed_abs, tag = 'smem constant byte address 0x4 - core index']
  #allocation1 [shape = 'u32[72,128]{1,0:T(1,128)}', space=vmem, size = 0x9000, scoped, tag = 'internal scratch']
  %s0 = inlined_call_operand.vmem [shape: f32[3], index: 0, kind: input, shape index: {}]
  %s1 = inlined_call_operand.vmem [shape: f32[1024,64], index: 1, kind: input, shape index: {}]
  %s2 = inlined_call_operand.vmem [shape: f32[1024,64], index: 2, kind: input, shape index: {}]
  %s3 = inlined_call_operand.vmem [shape: f32[1024,64], index: 3, kind: input, shape index: {}]
  %s4 = inlined_call_operand.vmem [shape: f32[1024,64], index: 4, kind: output, shape index: {}]
  %s5 = sld [smem:[#allocation0]]
  $region53: #{semantic_attention.3} parent=0
    _
  %s7 = ssub.s32 1, %s5
  %s8 = scalar_select 0, %s7, %s5
  $region1: #{semantic_attention.3} parent=0
    #allocation2 [shape = 'u8[512]{0}', space=smem, size = 0x200, scoped, tag = 'input window, operand 0, single buffered']
    #allocation3 [shape = 's32[2]{0}', space=sflag, size = 0x8, scoped, tag = 'scoped memory for semantic_attention.3']
    %9 = vsyncpa [#allocation3], 0
    loop: start=0, step=1, limit=6
    $region2: #{semantic_attention.3} parent=1 // loop_pre_header
      _
    $region3: #{semantic_attention.3} parent=1 // loop_header
      %s11 = sphi 0, %s15
      %p12 = scmp.ge.s32.totalorder %s11, 6
      %s19 = sphi 0, %s19
      %s21 = sphi 0, %s19
      %s22 = sphi 0, %s21
      %s36 = sphi 0, %s22
      %s42 = sphi 0, %s44
      %s45 = sphi 0, %s42
      %s46 = sphi 0, %s45
      %s62 = sphi 0, %s46
      %s68 = sphi 0, %s70
      %s71 = sphi 0, %s68
      %s72 = sphi 0, %s71
      %s88 = sphi 0, %s72
      %s94 = sphi 0, %s96
      %s97 = sphi 0, %s94
      %s98 = sphi 0, %s97
      %s114 = sphi 0, %s98
      %s120 = sphi 0, %s122
      %s123 = sphi 0, %s120
      %s124 = sphi 0, %s123
      %s140 = sphi 0, %s124
    $region4: #{semantic_attention.3} parent=1 // loop_header_branch
      %14 = sbr.rel (%p12) target = $region8
    $region5: #{semantic_attention.3} parent=1 // loop_body
      %s16 = ssub.s32 %s11, 1
      %s17 = ssub.s32 %s11, 2
      %s18 = sadd.s32 %s11, 1
      %s20 = sadd.s32 %s19, 1
      %p23 = scmp.eq.s32.totalorder %s11, 3
      %p24 = scmp.ne.s32.totalorder %s19, %s21
      %p25 = scmp.eq.s32.totalorder %s11, 0
      %p26 = por %p24, %p25
      %p27 = scmp.ne.s32.totalorder %s19, %s21
      %p28 = scmp.eq.s32.totalorder %s16, 3
      %p29 = por %p27, %p28
      %p30 = scmp.ne.s32.totalorder %s21, %s22
      %p31 = scmp.eq.s32.totalorder %s16, 0
      %p32 = por %p30, %p31
      %p33 = scmp.ne.s32.totalorder %s21, %s22
      %p34 = scmp.eq.s32.totalorder %s17, 3
      %p35 = por %p33, %p34
      %p37 = scmp.ne.s32.totalorder %s22, %s36
      %p38 = scmp.eq.s32.totalorder %s17, 0
      %p39 = por %p37, %p38
      %s40 = ssub.s32 %s11, %s18
      %p41 = scmp.eq.s32.totalorder %s40, 0
      %s43 = sadd.s32 %s42, 1
      %s44 = scalar_select %p41, %s42, %s43
      %p47 = pneg %p41
      %p48 = scmp.eq.s32.totalorder %s11, 3
      %p49 = por %p47, %p48
      %p50 = scmp.ne.s32.totalorder %s42, %s45
      %p51 = scmp.eq.s32.totalorder %s11, 0
      %p52 = por %p50, %p51
      %p53 = scmp.ne.s32.totalorder %s42, %s45
      %p54 = scmp.eq.s32.totalorder %s16, 3
      %p55 = por %p53, %p54
      %p56 = scmp.ne.s32.totalorder %s45, %s46
      %p57 = scmp.eq.s32.totalorder %s16, 0
      %p58 = por %p56, %p57
      %p59 = scmp.ne.s32.totalorder %s45, %s46
      %p60 = scmp.eq.s32.totalorder %s17, 3
      %p61 = por %p59, %p60
      %p63 = scmp.ne.s32.totalorder %s46, %s62
      %p64 = scmp.eq.s32.totalorder %s17, 0
      %p65 = por %p63, %p64
      %s66 = ssub.s32 %s11, %s18
      %p67 = scmp.eq.s32.totalorder %s66, 0
      %s69 = sadd.s32 %s68, 1
      %s70 = scalar_select %p67, %s68, %s69
      %p73 = pneg %p67
      %p74 = scmp.eq.s32.totalorder %s11, 3
      %p75 = por %p73, %p74
      %p76 = scmp.ne.s32.totalorder %s68, %s71
      %p77 = scmp.eq.s32.totalorder %s11, 0
      %p78 = por %p76, %p77
      %p79 = scmp.ne.s32.totalorder %s68, %s71
      %p80 = scmp.eq.s32.totalorder %s16, 3
      %p81 = por %p79, %p80
      %p82 = scmp.ne.s32.totalorder %s71, %s72
      %p83 = scmp.eq.s32.totalorder %s16, 0
      %p84 = por %p82, %p83
      %p85 = scmp.ne.s32.totalorder %s71, %s72
      %p86 = scmp.eq.s32.totalorder %s17, 3
      %p87 = por %p85, %p86
      %p89 = scmp.ne.s32.totalorder %s72, %s88
      %p90 = scmp.eq.s32.totalorder %s17, 0
      %p91 = por %p89, %p90
      %s92 = ssub.s32 %s11, %s18
      %p93 = scmp.eq.s32.totalorder %s92, 0
      %s95 = sadd.s32 %s94, 1
      %s96 = scalar_select %p93, %s94, %s95
      %p99 = pneg %p93
      %p100 = scmp.eq.s32.totalorder %s11, 3
      %p101 = por %p99, %p100
      %p102 = scmp.ne.s32.totalorder %s94, %s97
      %p103 = scmp.eq.s32.totalorder %s11, 0
      %p104 = por %p102, %p103
      %p105 = scmp.ne.s32.totalorder %s94, %s97
      %p106 = scmp.eq.s32.totalorder %s16, 3
      %p107 = por %p105, %p106
      %p108 = scmp.ne.s32.totalorder %s97, %s98
      %p109 = scmp.eq.s32.totalorder %s16, 0
      %p110 = por %p108, %p109
      %p111 = scmp.ne.s32.totalorder %s97, %s98
      %p112 = scmp.eq.s32.totalorder %s17, 3
      %p113 = por %p111, %p112
      %p115 = scmp.ne.s32.totalorder %s98, %s114
      %p116 = scmp.eq.s32.totalorder %s17, 0
      %p117 = por %p115, %p116
      %s118 = ssub.s32 %s11, %s18
      %p119 = scmp.eq.s32.totalorder %s118, 0
      %s121 = sadd.s32 %s120, 1
      %s122 = scalar_select %p119, %s120, %s121
      %p125 = pneg %p119
      %p126 = scmp.eq.s32.totalorder %s11, 3
      %p127 = por %p125, %p126
      %p128 = scmp.ne.s32.totalorder %s120, %s123
      %p129 = scmp.eq.s32.totalorder %s11, 0
      %p130 = por %p128, %p129
      %p131 = scmp.ne.s32.totalorder %s120, %s123
      %p132 = scmp.eq.s32.totalorder %s16, 3
      %p133 = por %p131, %p132
      %p134 = scmp.ne.s32.totalorder %s123, %s124
      %p135 = scmp.eq.s32.totalorder %s16, 0
      %p136 = por %p134, %p135
      %p137 = scmp.ne.s32.totalorder %s123, %s124
      %p138 = scmp.eq.s32.totalorder %s17, 3
      %p139 = por %p137, %p138
      %p141 = scmp.ne.s32.totalorder %s124, %s140
      %p142 = scmp.eq.s32.totalorder %s17, 0
      %p143 = por %p141, %p142
      %p144 = scmp.le.s32.totalorder 1, %s11
      %p145 = scmp.lt.s32.totalorder %s11, 5
      %p146 = pnand %p144, %p145
      %p147 = pneg %p146
      // Predicated region
      $region9: #{semantic_attention.3} parent=5 // pred_check
        _
      $region10: #{semantic_attention.3} parent=5 // pred_check_branch
        %149 = sbr.rel (%p146) target = $region12
      $region11: #{semantic_attention.3} parent=5 // pred_region
        %s150 = ssub.s32 %s11, 1
        // Predicated region
        $region13: #{semantic_attention.3} parent=11 // pred_check
          %p151 = pneg %p32
        $region14: #{semantic_attention.3} parent=11 // pred_check_branch
          %153 = sbr.rel (%p151) target = $region16
        $region15: #{semantic_attention.3} parent=11 // pred_region
          %155 = vsyncadd [#allocation3], 0
          %s157 = sshll.u32 %s0, 4
          %s158 = int_to_ptr.vmem [resolvable:$true] %s157
          %160 = dma.vmem_to_smem %s158, 16, [#allocation2], [#allocation3]
        $region16: #{semantic_attention.3} parent=11 // pred_fallthru
          _
      $region12: #{semantic_attention.3} parent=5 // pred_fallthru
        _
      %p161 = scmp.lt.s32.totalorder %s11, 4
      // Predicated region
      $region17: #{semantic_attention.3} parent=5 // pred_check
        %p162 = pneg %p161
      $region18: #{semantic_attention.3} parent=5 // pred_check_branch
        %164 = sbr.rel (%p162) target = $region20
      $region19: #{semantic_attention.3} parent=5 // pred_region
        // Predicated region
        $region21: #{semantic_attention.3} parent=19 // pred_check
          %p165 = pneg %p52
        $region22: #{semantic_attention.3} parent=19 // pred_check_branch
          %167 = sbr.rel (%p165) target = $region24
        $region23: #{semantic_attention.3} parent=19 // pred_region
          %s168 = smul.u32 32, %s11
          %p169 = scmp.lt.s32.totalorder %s168, 127
          %s170 = scalar_select %p169, %s168, 127
          %s171 = smul.addr %s170, 8
          %s172 = scalar_lea.vmem %s1, %s171
          %s173 = smul.u32 32, %s11
        $region24: #{semantic_attention.3} parent=19 // pred_fallthru
          _
        // Predicated region
        $region25: #{semantic_attention.3} parent=19 // pred_check
          %p174 = pneg %p78
        $region26: #{semantic_attention.3} parent=19 // pred_check_branch
          %176 = sbr.rel (%p174) target = $region28
        $region27: #{semantic_attention.3} parent=19 // pred_region
          %s177 = smul.u32 32, %s11
          %p178 = scmp.lt.s32.totalorder %s177, 127
          %s179 = scalar_select %p178, %s177, 127
          %s180 = smul.addr %s179, 8
          %s181 = scalar_lea.vmem %s2, %s180
          %s182 = smul.u32 32, %s11
        $region28: #{semantic_attention.3} parent=19 // pred_fallthru
          _
        // Predicated region
        $region29: #{semantic_attention.3} parent=19 // pred_check
          %p183 = pneg %p104
        $region30: #{semantic_attention.3} parent=19 // pred_check_branch
          %185 = sbr.rel (%p183) target = $region32
        $region31: #{semantic_attention.3} parent=19 // pred_region
          %s186 = smul.u32 32, %s11
          %p187 = scmp.lt.s32.totalorder %s186, 127
          %s188 = scalar_select %p187, %s186, 127
          %s189 = smul.addr %s188, 8
          %s190 = scalar_lea.vmem %s3, %s189
          %s191 = smul.u32 32, %s11
        $region32: #{semantic_attention.3} parent=19 // pred_fallthru
          _
      $region20: #{semantic_attention.3} parent=5 // pred_fallthru
        _
      %p192 = scmp.le.s32.totalorder 1, %s11
      %p193 = scmp.lt.s32.totalorder %s11, 5
      %p194 = pnand %p192, %p193
      %p195 = pneg %p194
      // Predicated region
      $region33: #{semantic_attention.3} parent=5 // pred_check
        _
      $region34: #{semantic_attention.3} parent=5 // pred_check_branch
        %197 = sbr.rel (%p194) target = $region36
      $region35: #{semantic_attention.3} parent=5 // pred_region
        %s198 = ssub.s32 %s11, 1
        // Predicated region
        $region37: #{semantic_attention.3} parent=35 // pred_check
          %p199 = pneg %p32
        $region38: #{semantic_attention.3} parent=35 // pred_check_branch
          %201 = sbr.rel (%p199) target = $region40
        $region39: #{semantic_attention.3} parent=35 // pred_region
          %203 = dma.done [#allocation3], 16
        $region40: #{semantic_attention.3} parent=35 // pred_fallthru
          _
        %204 = sfence
        %p205 = pneg %p32
        %p206 = pneg %p29
        %s207 = smul.u32 32, %s16
        %p208 = scmp.lt.s32.totalorder %s207, 127
        %s209 = scalar_select %p208, %s207, 127
        %s210 = smul.addr %s209, 8
        %s211 = scalar_lea.vmem %s1, %s210
        %p212 = pneg %p58
        %p213 = pneg %p55
        %s214 = smul.u32 32, %s16
        %p215 = scmp.lt.s32.totalorder %s214, 127
        %s216 = scalar_select %p215, %s214, 127
        %s217 = smul.addr %s216, 8
        %s218 = scalar_lea.vmem %s2, %s217
        %p219 = pneg %p84
        %p220 = pneg %p81
        %s221 = smul.u32 32, %s16
        %p222 = scmp.lt.s32.totalorder %s221, 127
        %s223 = scalar_select %p222, %s221, 127
        %s224 = smul.addr %s223, 8
        %s225 = scalar_lea.vmem %s3, %s224
        %p226 = pneg %p110
        %p227 = pneg %p107
        %p228 = pneg %p136
        %p229 = pneg %p133
        %s230 = smul.u32 32, %s16
        %p231 = scmp.lt.s32.totalorder %s230, 127
        %s232 = scalar_select %p231, %s230, 127
        %s233 = smul.addr %s232, 8
        %s234 = scalar_lea.vmem %s4, %s233
        %s235 = smul.u32 32, %s16
        %p236 = scmp.lt.s32.totalorder %s235, 127
        %s237 = scalar_select %p236, %s235, 127
        %s238 = smul.addr %s237, 8
        %s239 = scalar_lea.vmem %s1, %s238
        %s240 = smul.u32 32, %s16
        %s241 = smul.u32 32, %s16
        %p242 = scmp.lt.s32.totalorder %s241, 127
        %s243 = scalar_select %p242, %s241, 127
        %s244 = smul.addr %s243, 8
        %s245 = scalar_lea.vmem %s2, %s244
        %s246 = smul.u32 32, %s16
        %s247 = smul.u32 32, %s16
        %p248 = scmp.lt.s32.totalorder %s247, 127
        %s249 = scalar_select %p248, %s247, 127
        %s250 = smul.addr %s249, 8
        %s251 = scalar_lea.vmem %s3, %s250
        %s252 = smul.u32 32, %s16
        %s253 = smul.u32 32, %s16
        %p254 = scmp.lt.s32.totalorder %s253, 127
        %s255 = scalar_select %p254, %s253, 127
        %s256 = smul.addr %s255, 8
        %s257 = scalar_lea.vmem %s4, %s256
        %s258 = smul.u32 32, %s16
        %s259 = sld [smem:[#allocation2]]
        %v260 = vld [vmem:[%s239] sm:$0xff]
        %v261 = vld [vmem:[%s239 + $0x8] sm:$0xff]
        %v262 = vld [vmem:[%s239 + $0x10] sm:$0xff]
        %v263 = vld [vmem:[%s239 + $0x18] sm:$0xff]
        %v264 = vld [vmem:[%s239 + $0x20] sm:$0xff]
        %v265 = vld [vmem:[%s239 + $0x28] sm:$0xff]
        %v266 = vld [vmem:[%s239 + $0x30] sm:$0xff]
        %v267 = vld [vmem:[%s239 + $0x38] sm:$0xff]
        %v268 = vld [vmem:[%s239 + $0x40] sm:$0xff]
        %v269 = vld [vmem:[%s239 + $0x48] sm:$0xff]
        %v270 = vld [vmem:[%s239 + $0x50] sm:$0xff]
        %v271 = vld [vmem:[%s239 + $0x58] sm:$0xff]
        %v272 = vld [vmem:[%s239 + $0x60] sm:$0xff]
        %v273 = vld [vmem:[%s239 + $0x68] sm:$0xff]
        %v274 = vld [vmem:[%s239 + $0x70] sm:$0xff]
        %v275 = vld [vmem:[%s239 + $0x78] sm:$0xff]
        %v276 = vld [vmem:[%s239 + $0x80] sm:$0xff]
        %v277 = vld [vmem:[%s239 + $0x88] sm:$0xff]
        %v278 = vld [vmem:[%s239 + $0x90] sm:$0xff]
        %v279 = vld [vmem:[%s239 + $0x98] sm:$0xff]
        %v280 = vld [vmem:[%s239 + $0xa0] sm:$0xff]
        %v281 = vld [vmem:[%s239 + $0xa8] sm:$0xff]
        %v282 = vld [vmem:[%s239 + $0xb0] sm:$0xff]
        %v283 = vld [vmem:[%s239 + $0xb8] sm:$0xff]
        %v284 = vld [vmem:[%s239 + $0xc0] sm:$0xff]
        %v285 = vld [vmem:[%s239 + $0xc8] sm:$0xff]
        %v286 = vld [vmem:[%s239 + $0xd0] sm:$0xff]
        %v287 = vld [vmem:[%s239 + $0xd8] sm:$0xff]
        %v288 = vld [vmem:[%s239 + $0xe0] sm:$0xff]
        %v289 = vld [vmem:[%s239 + $0xe8] sm:$0xff]
        %v290 = vld [vmem:[%s239 + $0xf0] sm:$0xff]
        %v291 = vld [vmem:[%s239 + $0xf8] sm:$0xff]
        %v292 = vstv %s259
        %v293 = vmul.f32 %v292, %v260
        %v294 = vmul.f32 %v292, %v261
        %v295 = vmul.f32 %v292, %v262
        %v296 = vmul.f32 %v292, %v263
        %v297 = vmul.f32 %v292, %v264
        %v298 = vmul.f32 %v292, %v265
        %v299 = vmul.f32 %v292, %v266
        %v300 = vmul.f32 %v292, %v267
        %v301 = vmul.f32 %v292, %v268
        %v302 = vmul.f32 %v292, %v269
        %v303 = vmul.f32 %v292, %v270
        %v304 = vmul.f32 %v292, %v271
        %v305 = vmul.f32 %v292, %v272
        %v306 = vmul.f32 %v292, %v273
        %v307 = vmul.f32 %v292, %v274
        %v308 = vmul.f32 %v292, %v275
        %v309 = vmul.f32 %v292, %v276
        %v310 = vmul.f32 %v292, %v277
        %v311 = vmul.f32 %v292, %v278
        %v312 = vmul.f32 %v292, %v279
        %v313 = vmul.f32 %v292, %v280
        %v314 = vmul.f32 %v292, %v281
        %v315 = vmul.f32 %v292, %v282
        %v316 = vmul.f32 %v292, %v283
        %v317 = vmul.f32 %v292, %v284
        %v318 = vmul.f32 %v292, %v285
        %v319 = vmul.f32 %v292, %v286
        %v320 = vmul.f32 %v292, %v287
        %v321 = vmul.f32 %v292, %v288
        %v322 = vmul.f32 %v292, %v289
        %v323 = vmul.f32 %v292, %v290
        %v324 = vmul.f32 %v292, %v291
        %s325 = sld [smem:[#allocation2 + $0x1]]
        %v326 = vld [vmem:[%s245] sm:$0xff]
        %v327 = vld [vmem:[%s245 + $0x8] sm:$0xff]
        %v328 = vld [vmem:[%s245 + $0x10] sm:$0xff]
        %v329 = vld [vmem:[%s245 + $0x18] sm:$0xff]
        %v330 = vld [vmem:[%s245 + $0x20] sm:$0xff]
        %v331 = vld [vmem:[%s245 + $0x28] sm:$0xff]
        %v332 = vld [vmem:[%s245 + $0x30] sm:$0xff]
        %v333 = vld [vmem:[%s245 + $0x38] sm:$0xff]
        %v334 = vld [vmem:[%s245 + $0x40] sm:$0xff]
        %v335 = vld [vmem:[%s245 + $0x48] sm:$0xff]
        %v336 = vld [vmem:[%s245 + $0x50] sm:$0xff]
        %v337 = vld [vmem:[%s245 + $0x58] sm:$0xff]
        %v338 = vld [vmem:[%s245 + $0x60] sm:$0xff]
        %v339 = vld [vmem:[%s245 + $0x68] sm:$0xff]
        %v340 = vld [vmem:[%s245 + $0x70] sm:$0xff]
        %v341 = vld [vmem:[%s245 + $0x78] sm:$0xff]
        %v342 = vld [vmem:[%s245 + $0x80] sm:$0xff]
        %v343 = vld [vmem:[%s245 + $0x88] sm:$0xff]
        %v344 = vld [vmem:[%s245 + $0x90] sm:$0xff]
        %v345 = vld [vmem:[%s245 + $0x98] sm:$0xff]
        %v346 = vld [vmem:[%s245 + $0xa0] sm:$0xff]
        %v347 = vld [vmem:[%s245 + $0xa8] sm:$0xff]
        %v348 = vld [vmem:[%s245 + $0xb0] sm:$0xff]
        %v349 = vld [vmem:[%s245 + $0xb8] sm:$0xff]
        %v350 = vld [vmem:[%s245 + $0xc0] sm:$0xff]
        %v351 = vld [vmem:[%s245 + $0xc8] sm:$0xff]
        %v352 = vld [vmem:[%s245 + $0xd0] sm:$0xff]
        %v353 = vld [vmem:[%s245 + $0xd8] sm:$0xff]
        %v354 = vld [vmem:[%s245 + $0xe0] sm:$0xff]
        %v355 = vld [vmem:[%s245 + $0xe8] sm:$0xff]
        %v356 = vld [vmem:[%s245 + $0xf0] sm:$0xff]
        %v357 = vld [vmem:[%s245 + $0xf8] sm:$0xff]
        %v358 = vstv %s325
        %v359 = vmul.f32 %v358, %v326
        %v360 = vmul.f32 %v358, %v327
        %v361 = vmul.f32 %v358, %v328
        %v362 = vmul.f32 %v358, %v329
        %v363 = vmul.f32 %v358, %v330
        %v364 = vmul.f32 %v358, %v331
        %v365 = vmul.f32 %v358, %v332
        %v366 = vmul.f32 %v358, %v333
        %v367 = vmul.f32 %v358, %v334
        %v368 = vmul.f32 %v358, %v335
        %v369 = vmul.f32 %v358, %v336
        %v370 = vmul.f32 %v358, %v337
        %v371 = vmul.f32 %v358, %v338
        %v372 = vmul.f32 %v358, %v339
        %v373 = vmul.f32 %v358, %v340
        %v374 = vmul.f32 %v358, %v341
        %v375 = vmul.f32 %v358, %v342
        %v376 = vmul.f32 %v358, %v343
        %v377 = vmul.f32 %v358, %v344
        %v378 = vmul.f32 %v358, %v345
        %v379 = vmul.f32 %v358, %v346
        %v380 = vmul.f32 %v358, %v347
        %v381 = vmul.f32 %v358, %v348
        %v382 = vmul.f32 %v358, %v349
        %v383 = vmul.f32 %v358, %v350
        %v384 = vmul.f32 %v358, %v351
        %v385 = vmul.f32 %v358, %v352
        %v386 = vmul.f32 %v358, %v353
        %v387 = vmul.f32 %v358, %v354
        %v388 = vmul.f32 %v358, %v355
        %v389 = vmul.f32 %v358, %v356
        %v390 = vmul.f32 %v358, %v357
        %v391 = vadd.f32 %v293, %v359
        %v392 = vadd.f32 %v294, %v360
        %v393 = vadd.f32 %v295, %v361
        %v394 = vadd.f32 %v296, %v362
        %v395 = vadd.f32 %v297, %v363
        %v396 = vadd.f32 %v298, %v364
        %v397 = vadd.f32 %v299, %v365
        %v398 = vadd.f32 %v300, %v366
        %v399 = vadd.f32 %v301, %v367
        %v400 = vadd.f32 %v302, %v368
        %v401 = vadd.f32 %v303, %v369
        %v402 = vadd.f32 %v304, %v370
        %v403 = vadd.f32 %v305, %v371
        %v404 = vadd.f32 %v306, %v372
        %v405 = vadd.f32 %v307, %v373
        %v406 = vadd.f32 %v308, %v374
        %v407 = vadd.f32 %v309, %v375
        %v408 = vadd.f32 %v310, %v376
        %v409 = vadd.f32 %v311, %v377
        %v410 = vadd.f32 %v312, %v378
        %v411 = vadd.f32 %v313, %v379
        %v412 = vadd.f32 %v314, %v380
        %v413 = vadd.f32 %v315, %v381
        %v414 = vadd.f32 %v316, %v382
        %v415 = vadd.f32 %v317, %v383
        %v416 = vadd.f32 %v318, %v384
        %v417 = vadd.f32 %v319, %v385
        %v418 = vadd.f32 %v320, %v386
        %v419 = vadd.f32 %v321, %v387
        %v420 = vadd.f32 %v322, %v388
        %v421 = vadd.f32 %v323, %v389
        %v422 = vadd.f32 %v324, %v390
        %s423 = sld [smem:[#allocation2 + $0x2]]
        %v424 = vld [vmem:[%s251] sm:$0xff]
        %v425 = vld [vmem:[%s251 + $0x8] sm:$0xff]
        %v426 = vld [vmem:[%s251 + $0x10] sm:$0xff]
        %v427 = vld [vmem:[%s251 + $0x18] sm:$0xff]
        %v428 = vld [vmem:[%s251 + $0x20] sm:$0xff]
        %v429 = vld [vmem:[%s251 + $0x28] sm:$0xff]
        %v430 = vld [vmem:[%s251 + $0x30] sm:$0xff]
        %v431 = vld [vmem:[%s251 + $0x38] sm:$0xff]
        %v432 = vld [vmem:[%s251 + $0x40] sm:$0xff]
        %v433 = vld [vmem:[%s251 + $0x48] sm:$0xff]
        %v434 = vld [vmem:[%s251 + $0x50] sm:$0xff]
        %v435 = vld [vmem:[%s251 + $0x58] sm:$0xff]
        %v436 = vld [vmem:[%s251 + $0x60] sm:$0xff]
        %v437 = vld [vmem:[%s251 + $0x68] sm:$0xff]
        %v438 = vld [vmem:[%s251 + $0x70] sm:$0xff]
        %v439 = vld [vmem:[%s251 + $0x78] sm:$0xff]
        %v440 = vld [vmem:[%s251 + $0x80] sm:$0xff]
        %v441 = vld [vmem:[%s251 + $0x88] sm:$0xff]
        %v442 = vld [vmem:[%s251 + $0x90] sm:$0xff]
        %v443 = vld [vmem:[%s251 + $0x98] sm:$0xff]
        %v444 = vld [vmem:[%s251 + $0xa0] sm:$0xff]
        %v445 = vld [vmem:[%s251 + $0xa8] sm:$0xff]
        %v446 = vld [vmem:[%s251 + $0xb0] sm:$0xff]
        %v447 = vld [vmem:[%s251 + $0xb8] sm:$0xff]
        %v448 = vld [vmem:[%s251 + $0xc0] sm:$0xff]
        %v449 = vld [vmem:[%s251 + $0xc8] sm:$0xff]
        %v450 = vld [vmem:[%s251 + $0xd0] sm:$0xff]
        %v451 = vld [vmem:[%s251 + $0xd8] sm:$0xff]
        %v452 = vld [vmem:[%s251 + $0xe0] sm:$0xff]
        %v453 = vld [vmem:[%s251 + $0xe8] sm:$0xff]
        %v454 = vld [vmem:[%s251 + $0xf0] sm:$0xff]
        %v455 = vld [vmem:[%s251 + $0xf8] sm:$0xff]
        %v456 = vstv %s423
        %v457 = vmul.f32 %v456, %v424
        %v458 = vmul.f32 %v456, %v425
        %v459 = vmul.f32 %v456, %v426
        %v460 = vmul.f32 %v456, %v427
        %v461 = vmul.f32 %v456, %v428
        %v462 = vmul.f32 %v456, %v429
        %v463 = vmul.f32 %v456, %v430
        %v464 = vmul.f32 %v456, %v431
        %v465 = vmul.f32 %v456, %v432
        %v466 = vmul.f32 %v456, %v433
        %v467 = vmul.f32 %v456, %v434
        %v468 = vmul.f32 %v456, %v435
        %v469 = vmul.f32 %v456, %v436
        %v470 = vmul.f32 %v456, %v437
        %v471 = vmul.f32 %v456, %v438
        %v472 = vmul.f32 %v456, %v439
        %v473 = vmul.f32 %v456, %v440
        %v474 = vmul.f32 %v456, %v441
        %v475 = vmul.f32 %v456, %v442
        %v476 = vmul.f32 %v456, %v443
        %v477 = vmul.f32 %v456, %v444
        %v478 = vmul.f32 %v456, %v445
        %v479 = vmul.f32 %v456, %v446
        %v480 = vmul.f32 %v456, %v447
        %v481 = vmul.f32 %v456, %v448
        %v482 = vmul.f32 %v456, %v449
        %v483 = vmul.f32 %v456, %v450
        %v484 = vmul.f32 %v456, %v451
        %v485 = vmul.f32 %v456, %v452
        %v486 = vmul.f32 %v456, %v453
        %v487 = vmul.f32 %v456, %v454
        %v488 = vmul.f32 %v456, %v455
        %v489 = vadd.f32 %v391, %v457
        %v490 = vadd.f32 %v392, %v458
        %v491 = vadd.f32 %v393, %v459
        %v492 = vadd.f32 %v394, %v460
        %v493 = vadd.f32 %v395, %v461
        %v494 = vadd.f32 %v396, %v462
        %v495 = vadd.f32 %v397, %v463
        %v496 = vadd.f32 %v398, %v464
        %v497 = vadd.f32 %v399, %v465
        %v498 = vadd.f32 %v400, %v466
        %v499 = vadd.f32 %v401, %v467
        %v500 = vadd.f32 %v402, %v468
        %v501 = vadd.f32 %v403, %v469
        %v502 = vadd.f32 %v404, %v470
        %v503 = vadd.f32 %v405, %v471
        %v504 = vadd.f32 %v406, %v472
        %v505 = vadd.f32 %v407, %v473
        %v506 = vadd.f32 %v408, %v474
        %v507 = vadd.f32 %v409, %v475
        %v508 = vadd.f32 %v410, %v476
        %v509 = vadd.f32 %v411, %v477
        %v510 = vadd.f32 %v412, %v478
        %v511 = vadd.f32 %v413, %v479
        %v512 = vadd.f32 %v414, %v480
        %v513 = vadd.f32 %v415, %v481
        %v514 = vadd.f32 %v416, %v482
        %v515 = vadd.f32 %v417, %v483
        %v516 = vadd.f32 %v418, %v484
        %v517 = vadd.f32 %v419, %v485
        %v518 = vadd.f32 %v420, %v486
        %v519 = vadd.f32 %v421, %v487
        %v520 = vadd.f32 %v422, %v488
        %vm521 = vcmask 523264
        %522 = vst.msk [vmem:[%s257] sm:$0xff] %vm521, %v489
        %523 = vst.msk [vmem:[%s257 + $0x8] sm:$0xff] %vm521, %v490
        %524 = vst.msk [vmem:[%s257 + $0x10] sm:$0xff] %vm521, %v491
        %525 = vst.msk [vmem:[%s257 + $0x18] sm:$0xff] %vm521, %v492
        %526 = vst.msk [vmem:[%s257 + $0x20] sm:$0xff] %vm521, %v493
        %527 = vst.msk [vmem:[%s257 + $0x28] sm:$0xff] %vm521, %v494
        %528 = vst.msk [vmem:[%s257 + $0x30] sm:$0xff] %vm521, %v495
        %529 = vst.msk [vmem:[%s257 + $0x38] sm:$0xff] %vm521, %v496
        %530 = vst.msk [vmem:[%s257 + $0x40] sm:$0xff] %vm521, %v497
        %531 = vst.msk [vmem:[%s257 + $0x48] sm:$0xff] %vm521, %v498
        %532 = vst.msk [vmem:[%s257 + $0x50] sm:$0xff] %vm521, %v499
        %533 = vst.msk [vmem:[%s257 + $0x58] sm:$0xff] %vm521, %v500
        %534 = vst.msk [vmem:[%s257 + $0x60] sm:$0xff] %vm521, %v501
        %535 = vst.msk [vmem:[%s257 + $0x68] sm:$0xff] %vm521, %v502
        %536 = vst.msk [vmem:[%s257 + $0x70] sm:$0xff] %vm521, %v503
        %537 = vst.msk [vmem:[%s257 + $0x78] sm:$0xff] %vm521, %v504
        %538 = vst.msk [vmem:[%s257 + $0x80] sm:$0xff] %vm521, %v505
        %539 = vst.msk [vmem:[%s257 + $0x88] sm:$0xff] %vm521, %v506
        %540 = vst.msk [vmem:[%s257 + $0x90] sm:$0xff] %vm521, %v507
        %541 = vst.msk [vmem:[%s257 + $0x98] sm:$0xff] %vm521, %v508
        %542 = vst.msk [vmem:[%s257 + $0xa0] sm:$0xff] %vm521, %v509
        %543 = vst.msk [vmem:[%s257 + $0xa8] sm:$0xff] %vm521, %v510
        %544 = vst.msk [vmem:[%s257 + $0xb0] sm:$0xff] %vm521, %v511
        %545 = vst.msk [vmem:[%s257 + $0xb8] sm:$0xff] %vm521, %v512
        %546 = vst.msk [vmem:[%s257 + $0xc0] sm:$0xff] %vm521, %v513
        %547 = vst.msk [vmem:[%s257 + $0xc8] sm:$0xff] %vm521, %v514
        %548 = vst.msk [vmem:[%s257 + $0xd0] sm:$0xff] %vm521, %v515
        %549 = vst.msk [vmem:[%s257 + $0xd8] sm:$0xff] %vm521, %v516
        %550 = vst.msk [vmem:[%s257 + $0xe0] sm:$0xff] %vm521, %v517
        %551 = vst.msk [vmem:[%s257 + $0xe8] sm:$0xff] %vm521, %v518
        %552 = vst.msk [vmem:[%s257 + $0xf0] sm:$0xff] %vm521, %v519
        %553 = vst.msk [vmem:[%s257 + $0xf8] sm:$0xff] %vm521, %v520
        %s554 = smul.u32 32, %s16
        %p555 = scmp.lt.s32.totalorder %s554, 127
        %s556 = scalar_select %p555, %s554, 127
        %s557 = smul.addr %s556, 8
        %s558 = scalar_lea.vmem %s4, %s557
        // Predicated region
        $region41: #{semantic_attention.3} parent=35 // pred_check
          %p559 = pneg %p133
        $region42: #{semantic_attention.3} parent=35 // pred_check_branch
          %561 = sbr.rel (%p559) target = $region44
        $region43: #{semantic_attention.3} parent=35 // pred_region
          %s562 = smul.u32 32, %s16
        $region44: #{semantic_attention.3} parent=35 // pred_fallthru
          _
      $region36: #{semantic_attention.3} parent=5 // pred_fallthru
        _
      %p563 = scmp.le.s32.totalorder 2, %s11
      // Predicated region
      $region45: #{semantic_attention.3} parent=5 // pred_check
        %p564 = pneg %p563
      $region46: #{semantic_attention.3} parent=5 // pred_check_branch
        %566 = sbr.rel (%p564) target = $region48
      $region47: #{semantic_attention.3} parent=5 // pred_region
        %s567 = ssub.s32 %s11, 2
        // Predicated region
        $region49: #{semantic_attention.3} parent=47 // pred_check
          %p568 = pneg %p139
        $region50: #{semantic_attention.3} parent=47 // pred_check_branch
          %570 = sbr.rel (%p568) target = $region52
        $region51: #{semantic_attention.3} parent=47 // pred_region
          %s571 = smul.u32 32, %s17
          %p572 = scmp.lt.s32.totalorder %s571, 127
          %s573 = scalar_select %p572, %s571, 127
          %s574 = smul.addr %s573, 8
          %s575 = scalar_lea.vmem %s4, %s574
        $region52: #{semantic_attention.3} parent=47 // pred_fallthru
          _
      $region48: #{semantic_attention.3} parent=5 // pred_fallthru
        _
    $region6: #{semantic_attention.3} parent=1 // loop_footer
      %s15 = sadd.s32 1, %s11
    $region7: #{semantic_attention.3} parent=1 // loop_footer_branch
      %10 = sbr.rel target = $region3
    $region8: #{semantic_attention.3} parent=1 // loop_exit
      _
    %576 = vsyncpa [#allocation3], 1
    %s577 = scalar_lea.sflag [#allocation3], 1
    %578 = vsyncpa %s577, 1

// kernel: semantic_attention.2
$region0: #{semantic_attention.2}
  #allocation0 [shape = 'u32[]', space=smem, size = 0x4, offset = 0x4, fixed_abs, tag = 'smem constant byte address 0x4 - core index']
  #allocation1 [shape = 'u32[72,128]{1,0:T(1,128)}', space=vmem, size = 0x9000, scoped, tag = 'internal scratch']
  %s0 = inlined_call_operand.vmem [shape: f32[1024,64], index: 0, kind: input, shape index: {}]
  %s1 = inlined_call_operand.vmem [shape: f32[1024,64], index: 1, kind: input, shape index: {}]
  %s2 = inlined_call_operand.vmem [shape: f32[1024,64], index: 2, kind: input, shape index: {}]
  %s3 = inlined_call_operand.vmem [shape: f32[64,128], index: 3, kind: input, shape index: {}]
  %s4 = inlined_call_operand.vmem [shape: f32[1,128], index: 4, kind: input, shape index: {}]
  %s5 = inlined_call_operand.vmem [shape: f32[2,3,128], index: 5, kind: output, shape index: {}]
  %s6 = sld [smem:[#allocation0]]
  $region57: #{semantic_attention.2} parent=0
    _
  %s8 = ssub.s32 1, %s6
  %s9 = scalar_select 0, %s8, %s6
  loop: start=0, step=1, limit=6
  $region2: #{semantic_attention.2} parent=0 // loop_pre_header
    _
  $region3: #{semantic_attention.2} parent=0 // loop_header
    %s11 = sphi 0, %s15
    %p12 = scmp.ge.s32.totalorder %s11, 6
    %s18 = sphi 0, %s30
    %s19 = sphi 0, %s26
    %s20 = sphi 0, %s18
    %s21 = sphi 0, %s19
    %s22 = sphi 0, %s20
    %s23 = sphi 0, %s21
    %s37 = sphi 0, %s39
    %s40 = sphi 0, %s37
    %s41 = sphi 0, %s40
    %s57 = sphi 0, %s41
    %s67 = sphi 0, %s69
    %s70 = sphi 0, %s67
    %s71 = sphi 0, %s70
    %s87 = sphi 0, %s71
    %s97 = sphi 0, %s99
    %s100 = sphi 0, %s97
    %s101 = sphi 0, %s100
    %s117 = sphi 0, %s101
    %s121 = sphi 0, %s121
    %s123 = sphi 0, %s121
    %s124 = sphi 0, %s123
    %s138 = sphi 0, %s124
    %s142 = sphi 0, %s142
    %s144 = sphi 0, %s142
    %s145 = sphi 0, %s144
    %s159 = sphi 0, %s145
    %s165 = sphi 0, %s167
    %s168 = sphi 0, %s165
    %s169 = sphi 0, %s168
    %s185 = sphi 0, %s169
  $region4: #{semantic_attention.2} parent=0 // loop_header_branch
    %14 = sbr.rel (%p12) target = $region8
  $region5: #{semantic_attention.2} parent=0 // loop_body
    %s16 = ssub.s32 %s11, 1
    %s17 = ssub.s32 %s11, 2
    %s24 = sadd.s32 1, %s19
    %p25 = scmp.ge.s32.totalorder %s24, 2
    %s26 = scalar_select %p25, 0, %s24
    %s27 = sadd.s32 1, %s18
    %s28 = scalar_select %p25, %s27, %s18
    %p29 = scmp.ge.s32.totalorder %s28, 2
    %s30 = scalar_select %p29, 0, %s28
    %s31 = smul.u32 %s18, 2
    %s32 = sadd.s32 %s31, %s19
    %s33 = smul.u32 %s30, 2
    %s34 = sadd.s32 %s33, %s26
    %s35 = ssub.s32 %s32, %s34
    %p36 = scmp.eq.s32.totalorder %s35, 0
    %s38 = sadd.s32 %s37, 1
    %s39 = scalar_select %p36, %s37, %s38
    %p42 = pneg %p36
    %p43 = scmp.eq.s32.totalorder %s11, 3
    %p44 = por %p42, %p43
    %p45 = scmp.ne.s32.totalorder %s37, %s40
    %p46 = scmp.eq.s32.totalorder %s11, 0
    %p47 = por %p45, %p46
    %p48 = scmp.ne.s32.totalorder %s37, %s40
    %p49 = scmp.eq.s32.totalorder %s16, 3
    %p50 = por %p48, %p49
    %p51 = scmp.ne.s32.totalorder %s40, %s41
    %p52 = scmp.eq.s32.totalorder %s16, 0
    %p53 = por %p51, %p52
    %p54 = scmp.ne.s32.totalorder %s40, %s41
    %p55 = scmp.eq.s32.totalorder %s17, 3
    %p56 = por %p54, %p55
    %p58 = scmp.ne.s32.totalorder %s41, %s57
    %p59 = scmp.eq.s32.totalorder %s17, 0
    %p60 = por %p58, %p59
    %s61 = smul.u32 %s18, 2
    %s62 = sadd.s32 %s61, %s19
    %s63 = smul.u32 %s30, 2
    %s64 = sadd.s32 %s63, %s26
    %s65 = ssub.s32 %s62, %s64
    %p66 = scmp.eq.s32.totalorder %s65, 0
    %s68 = sadd.s32 %s67, 1
    %s69 = scalar_select %p66, %s67, %s68
    %p72 = pneg %p66
    %p73 = scmp.eq.s32.totalorder %s11, 3
    %p74 = por %p72, %p73
    %p75 = scmp.ne.s32.totalorder %s67, %s70
    %p76 = scmp.eq.s32.totalorder %s11, 0
    %p77 = por %p75, %p76
    %p78 = scmp.ne.s32.totalorder %s67, %s70
    %p79 = scmp.eq.s32.totalorder %s16, 3
    %p80 = por %p78, %p79
    %p81 = scmp.ne.s32.totalorder %s70, %s71
    %p82 = scmp.eq.s32.totalorder %s16, 0
    %p83 = por %p81, %p82
    %p84 = scmp.ne.s32.totalorder %s70, %s71
    %p85 = scmp.eq.s32.totalorder %s17, 3
    %p86 = por %p84, %p85
    %p88 = scmp.ne.s32.totalorder %s71, %s87
    %p89 = scmp.eq.s32.totalorder %s17, 0
    %p90 = por %p88, %p89
    %s91 = smul.u32 %s18, 2
    %s92 = sadd.s32 %s91, %s19
    %s93 = smul.u32 %s30, 2
    %s94 = sadd.s32 %s93, %s26
    %s95 = ssub.s32 %s92, %s94
    %p96 = scmp.eq.s32.totalorder %s95, 0
    %s98 = sadd.s32 %s97, 1
    %s99 = scalar_select %p96, %s97, %s98
    %p102 = pneg %p96
    %p103 = scmp.eq.s32.totalorder %s11, 3
    %p104 = por %p102, %p103
    %p105 = scmp.ne.s32.totalorder %s97, %s100
    %p106 = scmp.eq.s32.totalorder %s11, 0
    %p107 = por %p105, %p106
    %p108 = scmp.ne.s32.totalorder %s97, %s100
    %p109 = scmp.eq.s32.totalorder %s16, 3
    %p110 = por %p108, %p109
    %p111 = scmp.ne.s32.totalorder %s100, %s101
    %p112 = scmp.eq.s32.totalorder %s16, 0
    %p113 = por %p111, %p112
    %p114 = scmp.ne.s32.totalorder %s100, %s101
    %p115 = scmp.eq.s32.totalorder %s17, 3
    %p116 = por %p114, %p115
    %p118 = scmp.ne.s32.totalorder %s101, %s117
    %p119 = scmp.eq.s32.totalorder %s17, 0
    %p120 = por %p118, %p119
    %s122 = sadd.s32 %s121, 1
    %p125 = scmp.eq.s32.totalorder %s11, 3
    %p126 = scmp.ne.s32.totalorder %s121, %s123
    %p127 = scmp.eq.s32.totalorder %s11, 0
    %p128 = por %p126, %p127
    %p129 = scmp.ne.s32.totalorder %s121, %s123
    %p130 = scmp.eq.s32.totalorder %s16, 3
    %p131 = por %p129, %p130
    %p132 = scmp.ne.s32.totalorder %s123, %s124
    %p133 = scmp.eq.s32.totalorder %s16, 0
    %p134 = por %p132, %p133
    %p135 = scmp.ne.s32.totalorder %s123, %s124
    %p136 = scmp.eq.s32.totalorder %s17, 3
    %p137 = por %p135, %p136
    %p139 = scmp.ne.s32.totalorder %s124, %s138
    %p140 = scmp.eq.s32.totalorder %s17, 0
    %p141 = por %p139, %p140
    %s143 = sadd.s32 %s142, 1
    %p146 = scmp.eq.s32.totalorder %s11, 3
    %p147 = scmp.ne.s32.totalorder %s142, %s144
    %p148 = scmp.eq.s32.totalorder %s11, 0
    %p149 = por %p147, %p148
    %p150 = scmp.ne.s32.totalorder %s142, %s144
    %p151 = scmp.eq.s32.totalorder %s16, 3
    %p152 = por %p150, %p151
    %p153 = scmp.ne.s32.totalorder %s144, %s145
    %p154 = scmp.eq.s32.totalorder %s16, 0
    %p155 = por %p153, %p154
    %p156 = scmp.ne.s32.totalorder %s144, %s145
    %p157 = scmp.eq.s32.totalorder %s17, 3
    %p158 = por %p156, %p157
    %p160 = scmp.ne.s32.totalorder %s145, %s159
    %p161 = scmp.eq.s32.totalorder %s17, 0
    %p162 = por %p160, %p161
    %s163 = ssub.s32 %s18, %s30
    %p164 = scmp.eq.s32.totalorder %s163, 0
    %s166 = sadd.s32 %s165, 1
    %s167 = scalar_select %p164, %s165, %s166
    %p170 = pneg %p164
    %p171 = scmp.eq.s32.totalorder %s11, 3
    %p172 = por %p170, %p171
    %p173 = scmp.ne.s32.totalorder %s165, %s168
    %p174 = scmp.eq.s32.totalorder %s11, 0
    %p175 = por %p173, %p174
    %p176 = scmp.ne.s32.totalorder %s165, %s168
    %p177 = scmp.eq.s32.totalorder %s16, 3
    %p178 = por %p176, %p177
    %p179 = scmp.ne.s32.totalorder %s168, %s169
    %p180 = scmp.eq.s32.totalorder %s16, 0
    %p181 = por %p179, %p180
    %p182 = scmp.ne.s32.totalorder %s168, %s169
    %p183 = scmp.eq.s32.totalorder %s17, 3
    %p184 = por %p182, %p183
    %p186 = scmp.ne.s32.totalorder %s169, %s185
    %p187 = scmp.eq.s32.totalorder %s17, 0
    %p188 = por %p186, %p187
    %p189 = scmp.le.s32.totalorder 1, %s11
    %p190 = scmp.lt.s32.totalorder %s11, 5
    %p191 = pnand %p189, %p190
    %p192 = pneg %p191
    // Predicated region
    $region9: #{semantic_attention.2} parent=5 // pred_check
      _
    $region10: #{semantic_attention.2} parent=5 // pred_check_branch
      %194 = sbr.rel (%p191) target = $region12
    $region11: #{semantic_attention.2} parent=5 // pred_region
      %s195 = ssub.s32 %s11, 1
      // Predicated region
      $region13: #{semantic_attention.2} parent=11 // pred_check
        %p196 = pneg %p134
      $region14: #{semantic_attention.2} parent=11 // pred_check_branch
        %198 = sbr.rel (%p196) target = $region16
      $region15: #{semantic_attention.2} parent=11 // pred_region
        _
      $region16: #{semantic_attention.2} parent=11 // pred_fallthru
        _
      // Predicated region
      $region17: #{semantic_attention.2} parent=11 // pred_check
        %p199 = pneg %p155
      $region18: #{semantic_attention.2} parent=11 // pred_check_branch
        %201 = sbr.rel (%p199) target = $region20
      $region19: #{semantic_attention.2} parent=11 // pred_region
        _
      $region20: #{semantic_attention.2} parent=11 // pred_fallthru
        _
    $region12: #{semantic_attention.2} parent=5 // pred_fallthru
      _
    %p202 = scmp.lt.s32.totalorder %s11, 4
    // Predicated region
    $region21: #{semantic_attention.2} parent=5 // pred_check
      %p203 = pneg %p202
    $region22: #{semantic_attention.2} parent=5 // pred_check_branch
      %205 = sbr.rel (%p203) target = $region24
    $region23: #{semantic_attention.2} parent=5 // pred_region
      // Predicated region
      $region25: #{semantic_attention.2} parent=23 // pred_check
        %p206 = pneg %p47
      $region26: #{semantic_attention.2} parent=23 // pred_check_branch
        %208 = sbr.rel (%p206) target = $region28
      $region27: #{semantic_attention.2} parent=23 // pred_region
        %s209 = smul.u32 %s18, 2
        %s210 = sadd.s32 %s209, %s19
        %s211 = smul.u32 32, %s210
        %p212 = scmp.lt.s32.totalorder %s211, 127
        %s213 = scalar_select %p212, %s211, 127
        %s214 = smul.addr %s213, 8
        %s215 = scalar_lea.vmem %s0, %s214
        %s216 = smul.u32 %s18, 2
        %s217 = sadd.s32 %s216, %s19
        %s218 = smul.u32 32, %s217
      $region28: #{semantic_attention.2} parent=23 // pred_fallthru
        _
      // Predicated region
      $region29: #{semantic_attention.2} parent=23 // pred_check
        %p219 = pneg %p77
      $region30: #{semantic_attention.2} parent=23 // pred_check_branch
        %221 = sbr.rel (%p219) target = $region32
      $region31: #{semantic_attention.2} parent=23 // pred_region
        %s222 = smul.u32 %s18, 2
        %s223 = sadd.s32 %s222, %s19
        %s224 = smul.u32 32, %s223
        %p225 = scmp.lt.s32.totalorder %s224, 127
        %s226 = scalar_select %p225, %s224, 127
        %s227 = smul.addr %s226, 8
        %s228 = scalar_lea.vmem %s1, %s227
        %s229 = smul.u32 %s18, 2
        %s230 = sadd.s32 %s229, %s19
        %s231 = smul.u32 32, %s230
      $region32: #{semantic_attention.2} parent=23 // pred_fallthru
        _
      // Predicated region
      $region33: #{semantic_attention.2} parent=23 // pred_check
        %p232 = pneg %p107
      $region34: #{semantic_attention.2} parent=23 // pred_check_branch
        %234 = sbr.rel (%p232) target = $region36
      $region35: #{semantic_attention.2} parent=23 // pred_region
        %s235 = smul.u32 %s18, 2
        %s236 = sadd.s32 %s235, %s19
        %s237 = smul.u32 32, %s236
        %p238 = scmp.lt.s32.totalorder %s237, 127
        %s239 = scalar_select %p238, %s237, 127
        %s240 = smul.addr %s239, 8
        %s241 = scalar_lea.vmem %s2, %s240
        %s242 = smul.u32 %s18, 2
        %s243 = sadd.s32 %s242, %s19
        %s244 = smul.u32 32, %s243
      $region36: #{semantic_attention.2} parent=23 // pred_fallthru
        _
    $region24: #{semantic_attention.2} parent=5 // pred_fallthru
      _
    %p245 = scmp.le.s32.totalorder 1, %s11
    %p246 = scmp.lt.s32.totalorder %s11, 5
    %p247 = pnand %p245, %p246
    %p248 = pneg %p247
    // Predicated region
    $region37: #{semantic_attention.2} parent=5 // pred_check
      _
    $region38: #{semantic_attention.2} parent=5 // pred_check_branch
      %250 = sbr.rel (%p247) target = $region40
    $region39: #{semantic_attention.2} parent=5 // pred_region
      %s251 = ssub.s32 %s11, 1
      %s252 = smul.u32 %s20, 2
      %s253 = sadd.s32 %s252, %s21
      %s254 = smul.u32 32, %s253
      %p255 = scmp.lt.s32.totalorder %s254, 127
      %s256 = scalar_select %p255, %s254, 127
      %s257 = smul.addr %s256, 8
      %s258 = scalar_lea.vmem %s0, %s257
      %p259 = pneg %p53
      %p260 = pneg %p50
      %s261 = smul.u32 %s20, 2
      %s262 = sadd.s32 %s261, %s21
      %s263 = smul.u32 32, %s262
      %p264 = scmp.lt.s32.totalorder %s263, 127
      %s265 = scalar_select %p264, %s263, 127
      %s266 = smul.addr %s265, 8
      %s267 = scalar_lea.vmem %s1, %s266
      %p268 = pneg %p83
      %p269 = pneg %p80
      %s270 = smul.u32 %s20, 2
      %s271 = sadd.s32 %s270, %s21
      %s272 = smul.u32 32, %s271
      %p273 = scmp.lt.s32.totalorder %s272, 127
      %s274 = scalar_select %p273, %s272, 127
      %s275 = smul.addr %s274, 8
      %s276 = scalar_lea.vmem %s2, %s275
      %p277 = pneg %p113
      %p278 = pneg %p110
      %p279 = pneg %p134
      %p280 = pneg %p131
      %p281 = pneg %p155
      %p282 = pneg %p152
      %p283 = pneg %p181
      %p284 = pneg %p178
      %p285 = scmp.lt.s32.totalorder %s20, 1
      %s286 = scalar_select %p285, %s20, 1
      %s287 = smul.addr %s286, 4
      %s288 = scalar_lea.vmem %s5, %s287
      %s289 = smul.u32 %s20, 2
      %s290 = sadd.s32 %s289, %s21
      %s291 = smul.u32 32, %s290
      %p292 = scmp.lt.s32.totalorder %s291, 127
      %s293 = scalar_select %p292, %s291, 127
      %s294 = smul.addr %s293, 8
      %s295 = scalar_lea.vmem %s0, %s294
      %s296 = smul.u32 %s20, 2
      %s297 = sadd.s32 %s296, %s21
      %s298 = smul.u32 32, %s297
      %s299 = smul.u32 %s20, 2
      %s300 = sadd.s32 %s299, %s21
      %s301 = smul.u32 32, %s300
      %p302 = scmp.lt.s32.totalorder %s301, 127
      %s303 = scalar_select %p302, %s301, 127
      %s304 = smul.addr %s303, 8
      %s305 = scalar_lea.vmem %s1, %s304
      %s306 = smul.u32 %s20, 2
      %s307 = sadd.s32 %s306, %s21
      %s308 = smul.u32 32, %s307
      %s309 = smul.u32 %s20, 2
      %s310 = sadd.s32 %s309, %s21
      %s311 = smul.u32 32, %s310
      %p312 = scmp.lt.s32.totalorder %s311, 127
      %s313 = scalar_select %p312, %s311, 127
      %s314 = smul.addr %s313, 8
      %s315 = scalar_lea.vmem %s2, %s314
      %s316 = smul.u32 %s20, 2
      %s317 = sadd.s32 %s316, %s21
      %s318 = smul.u32 32, %s317
      %p319 = scmp.lt.s32.totalorder %s20, 1
      %s320 = scalar_select %p319, %s20, 1
      %s321 = smul.addr %s320, 4
      %s322 = scalar_lea.vmem %s5, %s321
      %p323 = scmp.eq.s32.totalorder %s21, 0
      // Predicated region
      $region41: #{semantic_attention.2} parent=39 // pred_check
        %p324 = pneg %p323
      $region42: #{semantic_attention.2} parent=39 // pred_check_branch
        %326 = sbr.rel (%p324) target = $region44
      $region43: #{semantic_attention.2} parent=39 // pred_region
        %327 = vst [vmem:[%s322] sm:$0x7] 0.0
      $region44: #{semantic_attention.2} parent=39 // pred_fallthru
        _
      %v328 = vld [vmem:[%s295] sm:$0xff]
      %v329 = vld [vmem:[%s295 + $0x8] sm:$0xff]
      %v330 = vld [vmem:[%s295 + $0x10] sm:$0xff]
      %v331 = vld [vmem:[%s295 + $0x18] sm:$0xff]
      %v332 = vld [vmem:[%s295 + $0x20] sm:$0xff]
      %v333 = vld [vmem:[%s295 + $0x28] sm:$0xff]
      %v334 = vld [vmem:[%s295 + $0x30] sm:$0xff]
      %v335 = vld [vmem:[%s295 + $0x38] sm:$0xff]
      %v336 = vld [vmem:[%s295 + $0x40] sm:$0xff]
      %v337 = vld [vmem:[%s295 + $0x48] sm:$0xff]
      %v338 = vld [vmem:[%s295 + $0x50] sm:$0xff]
      %v339 = vld [vmem:[%s295 + $0x58] sm:$0xff]
      %v340 = vld [vmem:[%s295 + $0x60] sm:$0xff]
      %v341 = vld [vmem:[%s295 + $0x68] sm:$0xff]
      %v342 = vld [vmem:[%s295 + $0x70] sm:$0xff]
      %v343 = vld [vmem:[%s295 + $0x78] sm:$0xff]
      %v344 = vld [vmem:[%s295 + $0x80] sm:$0xff]
      %v345 = vld [vmem:[%s295 + $0x88] sm:$0xff]
      %v346 = vld [vmem:[%s295 + $0x90] sm:$0xff]
      %v347 = vld [vmem:[%s295 + $0x98] sm:$0xff]
      %v348 = vld [vmem:[%s295 + $0xa0] sm:$0xff]
      %v349 = vld [vmem:[%s295 + $0xa8] sm:$0xff]
      %v350 = vld [vmem:[%s295 + $0xb0] sm:$0xff]
      %v351 = vld [vmem:[%s295 + $0xb8] sm:$0xff]
      %v352 = vld [vmem:[%s295 + $0xc0] sm:$0xff]
      %v353 = vld [vmem:[%s295 + $0xc8] sm:$0xff]
      %v354 = vld [vmem:[%s295 + $0xd0] sm:$0xff]
      %v355 = vld [vmem:[%s295 + $0xd8] sm:$0xff]
      %v356 = vld [vmem:[%s295 + $0xe0] sm:$0xff]
      %v357 = vld [vmem:[%s295 + $0xe8] sm:$0xff]
      %v358 = vld [vmem:[%s295 + $0xf0] sm:$0xff]
      %v359 = vld [vmem:[%s295 + $0xf8] sm:$0xff]
      %v360 = vld [vmem:[%s305] sm:$0xff]
      %v361 = vld [vmem:[%s305 + $0x8] sm:$0xff]
      %v362 = vld [vmem:[%s305 + $0x10] sm:$0xff]
      %v363 = vld [vmem:[%s305 + $0x18] sm:$0xff]
      %v364 = vld [vmem:[%s305 + $0x20] sm:$0xff]
      %v365 = vld [vmem:[%s305 + $0x28] sm:$0xff]
      %v366 = vld [vmem:[%s305 + $0x30] sm:$0xff]
      %v367 = vld [vmem:[%s305 + $0x38] sm:$0xff]
      %v368 = vld [vmem:[%s305 + $0x40] sm:$0xff]
      %v369 = vld [vmem:[%s305 + $0x48] sm:$0xff]
      %v370 = vld [vmem:[%s305 + $0x50] sm:$0xff]
      %v371 = vld [vmem:[%s305 + $0x58] sm:$0xff]
      %v372 = vld [vmem:[%s305 + $0x60] sm:$0xff]
      %v373 = vld [vmem:[%s305 + $0x68] sm:$0xff]
      %v374 = vld [vmem:[%s305 + $0x70] sm:$0xff]
      %v375 = vld [vmem:[%s305 + $0x78] sm:$0xff]
      %v376 = vld [vmem:[%s305 + $0x80] sm:$0xff]
      %v377 = vld [vmem:[%s305 + $0x88] sm:$0xff]
      %v378 = vld [vmem:[%s305 + $0x90] sm:$0xff]
      %v379 = vld [vmem:[%s305 + $0x98] sm:$0xff]
      %v380 = vld [vmem:[%s305 + $0xa0] sm:$0xff]
      %v381 = vld [vmem:[%s305 + $0xa8] sm:$0xff]
      %v382 = vld [vmem:[%s305 + $0xb0] sm:$0xff]
      %v383 = vld [vmem:[%s305 + $0xb8] sm:$0xff]
      %v384 = vld [vmem:[%s305 + $0xc0] sm:$0xff]
      %v385 = vld [vmem:[%s305 + $0xc8] sm:$0xff]
      %v386 = vld [vmem:[%s305 + $0xd0] sm:$0xff]
      %v387 = vld [vmem:[%s305 + $0xd8] sm:$0xff]
      %v388 = vld [vmem:[%s305 + $0xe0] sm:$0xff]
      %v389 = vld [vmem:[%s305 + $0xe8] sm:$0xff]
      %v390 = vld [vmem:[%s305 + $0xf0] sm:$0xff]
      %v391 = vld [vmem:[%s305 + $0xf8] sm:$0xff]
      %v392 = vld [vmem:[%s315] sm:$0xff]
      %v393 = vld [vmem:[%s315 + $0x8] sm:$0xff]
      %v394 = vld [vmem:[%s315 + $0x10] sm:$0xff]
      %v395 = vld [vmem:[%s315 + $0x18] sm:$0xff]
      %v396 = vld [vmem:[%s315 + $0x20] sm:$0xff]
      %v397 = vld [vmem:[%s315 + $0x28] sm:$0xff]
      %v398 = vld [vmem:[%s315 + $0x30] sm:$0xff]
      %v399 = vld [vmem:[%s315 + $0x38] sm:$0xff]
      %v400 = vld [vmem:[%s315 + $0x40] sm:$0xff]
      %v401 = vld [vmem:[%s315 + $0x48] sm:$0xff]
      %v402 = vld [vmem:[%s315 + $0x50] sm:$0xff]
      %v403 = vld [vmem:[%s315 + $0x58] sm:$0xff]
      %v404 = vld [vmem:[%s315 + $0x60] sm:$0xff]
      %v405 = vld [vmem:[%s315 + $0x68] sm:$0xff]
      %v406 = vld [vmem:[%s315 + $0x70] sm:$0xff]
      %v407 = vld [vmem:[%s315 + $0x78] sm:$0xff]
      %v408 = vld [vmem:[%s315 + $0x80] sm:$0xff]
      %v409 = vld [vmem:[%s315 + $0x88] sm:$0xff]
      %v410 = vld [vmem:[%s315 + $0x90] sm:$0xff]
      %v411 = vld [vmem:[%s315 + $0x98] sm:$0xff]
      %v412 = vld [vmem:[%s315 + $0xa0] sm:$0xff]
      %v413 = vld [vmem:[%s315 + $0xa8] sm:$0xff]
      %v414 = vld [vmem:[%s315 + $0xb0] sm:$0xff]
      %v415 = vld [vmem:[%s315 + $0xb8] sm:$0xff]
      %v416 = vld [vmem:[%s315 + $0xc0] sm:$0xff]
      %v417 = vld [vmem:[%s315 + $0xc8] sm:$0xff]
      %v418 = vld [vmem:[%s315 + $0xd0] sm:$0xff]
      %v419 = vld [vmem:[%s315 + $0xd8] sm:$0xff]
      %v420 = vld [vmem:[%s315 + $0xe0] sm:$0xff]
      %v421 = vld [vmem:[%s315 + $0xe8] sm:$0xff]
      %v422 = vld [vmem:[%s315 + $0xf0] sm:$0xff]
      %v423 = vld [vmem:[%s315 + $0xf8] sm:$0xff]
      %v424 = vld [vmem:[%s3] sm:$0xff]
      %v425 = vld [vmem:[%s3 + $0x8] sm:$0xff]
      %v426 = vld [vmem:[%s3 + $0x10] sm:$0xff]
      %v427 = vld [vmem:[%s3 + $0x18] sm:$0xff]
      %v428 = vld [vmem:[%s3 + $0x20] sm:$0xff]
      %v429 = vld [vmem:[%s3 + $0x28] sm:$0xff]
      %v430 = vld [vmem:[%s3 + $0x30] sm:$0xff]
      %v431 = vld [vmem:[%s3 + $0x38] sm:$0xff]
      %v432 = vld [vmem:[%s4] sm:$0x1]
      %v434 = vperm.slane %v432, 0
      %vm436 = vcmask 523264
      %v438 = vsel %vm436, %v328, 0
      %v441 = vsel %vm436, %v329, 0
      %v444 = vsel %vm436, %v330, 0
      %v447 = vsel %vm436, %v331, 0
      %v450 = vsel %vm436, %v332, 0
      %v453 = vsel %vm436, %v333, 0
      %v456 = vsel %vm436, %v334, 0
      %v459 = vsel %vm436, %v335, 0
      %v462 = vsel %vm436, %v336, 0
      %v465 = vsel %vm436, %v337, 0
      %v468 = vsel %vm436, %v338, 0
      %v471 = vsel %vm436, %v339, 0
      %v474 = vsel %vm436, %v340, 0
      %v477 = vsel %vm436, %v341, 0
      %v480 = vsel %vm436, %v342, 0
      %v483 = vsel %vm436, %v343, 0
      %v486 = vsel %vm436, %v344, 0
      %v489 = vsel %vm436, %v345, 0
      %v492 = vsel %vm436, %v346, 0
      %v495 = vsel %vm436, %v347, 0
      %v498 = vsel %vm436, %v348, 0
      %v501 = vsel %vm436, %v349, 0
      %v504 = vsel %vm436, %v350, 0
      %v507 = vsel %vm436, %v351, 0
      %v510 = vsel %vm436, %v352, 0
      %v513 = vsel %vm436, %v353, 0
      %v516 = vsel %vm436, %v354, 0
      %v519 = vsel %vm436, %v355, 0
      %v522 = vsel %vm436, %v356, 0
      %v525 = vsel %vm436, %v357, 0
      %v528 = vsel %vm436, %v358, 0
      %v531 = vsel %vm436, %v359, 0
      %v534 = vsel %vm436, %v360, 0
      %v537 = vsel %vm436, %v361, 0
      %v540 = vsel %vm436, %v362, 0
      %v543 = vsel %vm436, %v363, 0
      %v546 = vsel %vm436, %v364, 0
      %v549 = vsel %vm436, %v365, 0
      %v552 = vsel %vm436, %v366, 0
      %v555 = vsel %vm436, %v367, 0
      %v558 = vsel %vm436, %v368, 0
      %v561 = vsel %vm436, %v369, 0
      %v564 = vsel %vm436, %v370, 0
      %v567 = vsel %vm436, %v371, 0
      %v570 = vsel %vm436, %v372, 0
      %v573 = vsel %vm436, %v373, 0
      %v576 = vsel %vm436, %v374, 0
      %v579 = vsel %vm436, %v375, 0
      %v582 = vsel %vm436, %v376, 0
      %v585 = vsel %vm436, %v377, 0
      %v588 = vsel %vm436, %v378, 0
      %v591 = vsel %vm436, %v379, 0
      %v594 = vsel %vm436, %v380, 0
      %v597 = vsel %vm436, %v381, 0
      %v600 = vsel %vm436, %v382, 0
      %v603 = vsel %vm436, %v383, 0
      %v606 = vsel %vm436, %v384, 0
      %v609 = vsel %vm436, %v385, 0
      %v612 = vsel %vm436, %v386, 0
      %v615 = vsel %vm436, %v387, 0
      %v618 = vsel %vm436, %v388, 0
      %v621 = vsel %vm436, %v389, 0
      %v624 = vsel %vm436, %v390, 0
      %v627 = vsel %vm436, %v391, 0
      %v630 = vsel %vm436, %v392, 0
      %v633 = vsel %vm436, %v393, 0
      %v636 = vsel %vm436, %v394, 0
      %v639 = vsel %vm436, %v395, 0
      %v642 = vsel %vm436, %v396, 0
      %v645 = vsel %vm436, %v397, 0
      %v648 = vsel %vm436, %v398, 0
      %v651 = vsel %vm436, %v399, 0
      %v654 = vsel %vm436, %v400, 0
      %v657 = vsel %vm436, %v401, 0
      %v660 = vsel %vm436, %v402, 0
      %v663 = vsel %vm436, %v403, 0
      %v666 = vsel %vm436, %v404, 0
      %v669 = vsel %vm436, %v405, 0
      %v672 = vsel %vm436, %v406, 0
      %v675 = vsel %vm436, %v407, 0
      %v678 = vsel %vm436, %v408, 0
      %v681 = vsel %vm436, %v409, 0
      %v684 = vsel %vm436, %v410, 0
      %v687 = vsel %vm436, %v411, 0
      %v690 = vsel %vm436, %v412, 0
      %v693 = vsel %vm436, %v413, 0
      %v696 = vsel %vm436, %v414, 0
      %v699 = vsel %vm436, %v415, 0
      %v702 = vsel %vm436, %v416, 0
      %v705 = vsel %vm436, %v417, 0
      %v708 = vsel %vm436, %v418, 0
      %v711 = vsel %vm436, %v419, 0
      %v714 = vsel %vm436, %v420, 0
      %v717 = vsel %vm436, %v421, 0
      %v720 = vsel %vm436, %v422, 0
      %v723 = vsel %vm436, %v423, 0
      %725 = vmatpush.msra.mxu0 0.0
      %726 = vmatpush.msra.mxu0 0.0
      %727 = vmatpush.msra.mxu0 0.0
      %728 = vmatpush.msra.mxu0 0.0
      %729 = vmatpush.msra.mxu0 0.0
      %730 = vmatpush.msra.mxu0 0.0
      %731 = vmatpush.msra.mxu0 0.0
      %732 = vmatpush.msra.mxu0 0.0
      %733 = vmatpush.msra.mxu0 %v431
      %734 = vmatpush.msra.mxu0 %v430
      %735 = vmatpush.msra.mxu0 %v429
      %736 = vmatpush.msra.mxu0 %v428
      %737 = vmatpush.msra.mxu0 %v427
      %738 = vmatpush.msra.mxu0 %v426
      %739 = vmatpush.msra.mxu0 %v425
      %740 = vmatpush.msra.mxu0 %v424
      %741 = vmatmul.f32.gmra.mxu0 %v438
      %v742 = vpop.f32.mrf.mxu0
      %v743 = vadd.f32 %v434, %v742
      %744 = vmatmul.f32.gmra.mxu0 %v441
      %v745 = vpop.f32.mrf.mxu0
      %v746 = vadd.f32 %v434, %v745
      %747 = vmatmul.f32.gmra.mxu0 %v444
      %v748 = vpop.f32.mrf.mxu0
      %v749 = vadd.f32 %v434, %v748
      %750 = vmatmul.f32.gmra.mxu0 %v447
      %v751 = vpop.f32.mrf.mxu0
      %v752 = vadd.f32 %v434, %v751
      %753 = vmatmul.f32.gmra.mxu0 %v450
      %v754 = vpop.f32.mrf.mxu0
      %v755 = vadd.f32 %v434, %v754
      %756 = vmatmul.f32.gmra.mxu0 %v453
      %v757 = vpop.f32.mrf.mxu0
      %v758 = vadd.f32 %v434, %v757
      %759 = vmatmul.f32.gmra.mxu0 %v456
      %v760 = vpop.f32.mrf.mxu0
      %v761 = vadd.f32 %v434, %v760
      %762 = vmatmul.f32.gmra.mxu0 %v459
      %v763 = vpop.f32.mrf.mxu0
      %v764 = vadd.f32 %v434, %v763
      %765 = vmatmul.f32.gmra.mxu0 %v462
      %v766 = vpop.f32.mrf.mxu0
      %v767 = vadd.f32 %v434, %v766
      %768 = vmatmul.f32.gmra.mxu0 %v465
      %v769 = vpop.f32.mrf.mxu0
      %v770 = vadd.f32 %v434, %v769
      %771 = vmatmul.f32.gmra.mxu0 %v468
      %v772 = vpop.f32.mrf.mxu0
      %v773 = vadd.f32 %v434, %v772
      %774 = vmatmul.f32.gmra.mxu0 %v471
      %v775 = vpop.f32.mrf.mxu0
      %v776 = vadd.f32 %v434, %v775
      %777 = vmatmul.f32.gmra.mxu0 %v474
      %v778 = vpop.f32.mrf.mxu0
      %v779 = vadd.f32 %v434, %v778
      %780 = vmatmul.f32.gmra.mxu0 %v477
      %v781 = vpop.f32.mrf.mxu0
      %v782 = vadd.f32 %v434, %v781
      %783 = vmatmul.f32.gmra.mxu0 %v480
      %v784 = vpop.f32.mrf.mxu0
      %v785 = vadd.f32 %v434, %v784
      %786 = vmatmul.f32.gmra.mxu0 %v483
      %v787 = vpop.f32.mrf.mxu0
      %v788 = vadd.f32 %v434, %v787
      %789 = vmatmul.f32.gmra.mxu0 %v486
      %v790 = vpop.f32.mrf.mxu0
      %v791 = vadd.f32 %v434, %v790
      %792 = vmatmul.f32.gmra.mxu0 %v489
      %v793 = vpop.f32.mrf.mxu0
      %v794 = vadd.f32 %v434, %v793
      %795 = vmatmul.f32.gmra.mxu0 %v492
      %v796 = vpop.f32.mrf.mxu0
      %v797 = vadd.f32 %v434, %v796
      %798 = vmatmul.f32.gmra.mxu0 %v495
      %v799 = vpop.f32.mrf.mxu0
      %v800 = vadd.f32 %v434, %v799
      %801 = vmatmul.f32.gmra.mxu0 %v498
      %v802 = vpop.f32.mrf.mxu0
      %v803 = vadd.f32 %v434, %v802
      %804 = vmatmul.f32.gmra.mxu0 %v501
      %v805 = vpop.f32.mrf.mxu0
      %v806 = vadd.f32 %v434, %v805
      %807 = vmatmul.f32.gmra.mxu0 %v504
      %v808 = vpop.f32.mrf.mxu0
      %v809 = vadd.f32 %v434, %v808
      %810 = vmatmul.f32.gmra.mxu0 %v507
      %v811 = vpop.f32.mrf.mxu0
      %v812 = vadd.f32 %v434, %v811
      %813 = vmatmul.f32.gmra.mxu0 %v510
      %v814 = vpop.f32.mrf.mxu0
      %v815 = vadd.f32 %v434, %v814
      %816 = vmatmul.f32.gmra.mxu0 %v513
      %v817 = vpop.f32.mrf.mxu0
      %v818 = vadd.f32 %v434, %v817
      %819 = vmatmul.f32.gmra.mxu0 %v516
      %v820 = vpop.f32.mrf.mxu0
      %v821 = vadd.f32 %v434, %v820
      %822 = vmatmul.f32.gmra.mxu0 %v519
      %v823 = vpop.f32.mrf.mxu0
      %v824 = vadd.f32 %v434, %v823
      %825 = vmatmul.f32.gmra.mxu0 %v522
      %v826 = vpop.f32.mrf.mxu0
      %v827 = vadd.f32 %v434, %v826
      %828 = vmatmul.f32.gmra.mxu0 %v525
      %v829 = vpop.f32.mrf.mxu0
      %v830 = vadd.f32 %v434, %v829
      %831 = vmatmul.f32.gmra.mxu0 %v528
      %v832 = vpop.f32.mrf.mxu0
      %v833 = vadd.f32 %v434, %v832
      %834 = vmatmul.f32.gmra.mxu0 %v531
      %v835 = vpop.f32.mrf.mxu0
      %v836 = vadd.f32 %v434, %v835
      %837 = vmatmul.f32.gmra.mxu0 %v534
      %v838 = vpop.f32.mrf.mxu0
      %v839 = vadd.f32 %v434, %v838
      %840 = vmatmul.f32.gmra.mxu0 %v537
      %v841 = vpop.f32.mrf.mxu0
      %v842 = vadd.f32 %v434, %v841
      %843 = vmatmul.f32.gmra.mxu0 %v540
      %v844 = vpop.f32.mrf.mxu0
      %v845 = vadd.f32 %v434, %v844
      %846 = vmatmul.f32.gmra.mxu0 %v543
      %v847 = vpop.f32.mrf.mxu0
      %v848 = vadd.f32 %v434, %v847
      %849 = vmatmul.f32.gmra.mxu0 %v546
      %v850 = vpop.f32.mrf.mxu0
      %v851 = vadd.f32 %v434, %v850
      %852 = vmatmul.f32.gmra.mxu0 %v549
      %v853 = vpop.f32.mrf.mxu0
      %v854 = vadd.f32 %v434, %v853
      %855 = vmatmul.f32.gmra.mxu0 %v552
      %v856 = vpop.f32.mrf.mxu0
      %v857 = vadd.f32 %v434, %v856
      %858 = vmatmul.f32.gmra.mxu0 %v555
      %v859 = vpop.f32.mrf.mxu0
      %v860 = vadd.f32 %v434, %v859
      %861 = vmatmul.f32.gmra.mxu0 %v558
      %v862 = vpop.f32.mrf.mxu0
      %v863 = vadd.f32 %v434, %v862
      %864 = vmatmul.f32.gmra.mxu0 %v561
      %v865 = vpop.f32.mrf.mxu0
      %v866 = vadd.f32 %v434, %v865
      %867 = vmatmul.f32.gmra.mxu0 %v564
      %v868 = vpop.f32.mrf.mxu0
      %v869 = vadd.f32 %v434, %v868
      %870 = vmatmul.f32.gmra.mxu0 %v567
      %v871 = vpop.f32.mrf.mxu0
      %v872 = vadd.f32 %v434, %v871
      %873 = vmatmul.f32.gmra.mxu0 %v570
      %v874 = vpop.f32.mrf.mxu0
      %v875 = vadd.f32 %v434, %v874
      %876 = vmatmul.f32.gmra.mxu0 %v573
      %v877 = vpop.f32.mrf.mxu0
      %v878 = vadd.f32 %v434, %v877
      %879 = vmatmul.f32.gmra.mxu0 %v576
      %v880 = vpop.f32.mrf.mxu0
      %v881 = vadd.f32 %v434, %v880
      %882 = vmatmul.f32.gmra.mxu0 %v579
      %v883 = vpop.f32.mrf.mxu0
      %v884 = vadd.f32 %v434, %v883
      %885 = vmatmul.f32.gmra.mxu0 %v582
      %v886 = vpop.f32.mrf.mxu0
      %v887 = vadd.f32 %v434, %v886
      %888 = vmatmul.f32.gmra.mxu0 %v585
      %v889 = vpop.f32.mrf.mxu0
      %v890 = vadd.f32 %v434, %v889
      %891 = vmatmul.f32.gmra.mxu0 %v588
      %v892 = vpop.f32.mrf.mxu0
      %v893 = vadd.f32 %v434, %v892
      %894 = vmatmul.f32.gmra.mxu0 %v591
      %v895 = vpop.f32.mrf.mxu0
      %v896 = vadd.f32 %v434, %v895
      %897 = vmatmul.f32.gmra.mxu0 %v594
      %v898 = vpop.f32.mrf.mxu0
      %v899 = vadd.f32 %v434, %v898
      %900 = vmatmul.f32.gmra.mxu0 %v597
      %v901 = vpop.f32.mrf.mxu0
      %v902 = vadd.f32 %v434, %v901
      %903 = vmatmul.f32.gmra.mxu0 %v600
      %v904 = vpop.f32.mrf.mxu0
      %v905 = vadd.f32 %v434, %v904
      %906 = vmatmul.f32.gmra.mxu0 %v603
      %v907 = vpop.f32.mrf.mxu0
      %v908 = vadd.f32 %v434, %v907
      %909 = vmatmul.f32.gmra.mxu0 %v606
      %v910 = vpop.f32.mrf.mxu0
      %v911 = vadd.f32 %v434, %v910
      %912 = vmatmul.f32.gmra.mxu0 %v609
      %v913 = vpop.f32.mrf.mxu0
      %v914 = vadd.f32 %v434, %v913
      %915 = vmatmul.f32.gmra.mxu0 %v612
      %v916 = vpop.f32.mrf.mxu0
      %v917 = vadd.f32 %v434, %v916
      %918 = vmatmul.f32.gmra.mxu0 %v615
      %v919 = vpop.f32.mrf.mxu0
      %v920 = vadd.f32 %v434, %v919
      %921 = vmatmul.f32.gmra.mxu0 %v618
      %v922 = vpop.f32.mrf.mxu0
      %v923 = vadd.f32 %v434, %v922
      %924 = vmatmul.f32.gmra.mxu0 %v621
      %v925 = vpop.f32.mrf.mxu0
      %v926 = vadd.f32 %v434, %v925
      %927 = vmatmul.f32.gmra.mxu0 %v624
      %v928 = vpop.f32.mrf.mxu0
      %v929 = vadd.f32 %v434, %v928
      %930 = vmatmul.f32.gmra.mxu0 %v627
      %v931 = vpop.f32.mrf.mxu0
      %v932 = vadd.f32 %v434, %v931
      %933 = vmatmul.f32.gmra.mxu0 %v630
      %v934 = vpop.f32.mrf.mxu0
      %v935 = vadd.f32 %v434, %v934
      %936 = vmatmul.f32.gmra.mxu0 %v633
      %v937 = vpop.f32.mrf.mxu0
      %v938 = vadd.f32 %v434, %v937
      %939 = vmatmul.f32.gmra.mxu0 %v636
      %v940 = vpop.f32.mrf.mxu0
      %v941 = vadd.f32 %v434, %v940
      %942 = vmatmul.f32.gmra.mxu0 %v639
      %v943 = vpop.f32.mrf.mxu0
      %v944 = vadd.f32 %v434, %v943
      %945 = vmatmul.f32.gmra.mxu0 %v642
      %v946 = vpop.f32.mrf.mxu0
      %v947 = vadd.f32 %v434, %v946
      %948 = vmatmul.f32.gmra.mxu0 %v645
      %v949 = vpop.f32.mrf.mxu0
      %v950 = vadd.f32 %v434, %v949
      %951 = vmatmul.f32.gmra.mxu0 %v648
      %v952 = vpop.f32.mrf.mxu0
      %v953 = vadd.f32 %v434, %v952
      %954 = vmatmul.f32.gmra.mxu0 %v651
      %v955 = vpop.f32.mrf.mxu0
      %v956 = vadd.f32 %v434, %v955
      %957 = vmatmul.f32.gmra.mxu0 %v654
      %v958 = vpop.f32.mrf.mxu0
      %v959 = vadd.f32 %v434, %v958
      %960 = vmatmul.f32.gmra.mxu0 %v657
      %v961 = vpop.f32.mrf.mxu0
      %v962 = vadd.f32 %v434, %v961
      %963 = vmatmul.f32.gmra.mxu0 %v660
      %v964 = vpop.f32.mrf.mxu0
      %v965 = vadd.f32 %v434, %v964
      %966 = vmatmul.f32.gmra.mxu0 %v663
      %v967 = vpop.f32.mrf.mxu0
      %v968 = vadd.f32 %v434, %v967
      %969 = vmatmul.f32.gmra.mxu0 %v666
      %v970 = vpop.f32.mrf.mxu0
      %v971 = vadd.f32 %v434, %v970
      %972 = vmatmul.f32.gmra.mxu0 %v669
      %v973 = vpop.f32.mrf.mxu0
      %v974 = vadd.f32 %v434, %v973
      %975 = vmatmul.f32.gmra.mxu0 %v672
      %v976 = vpop.f32.mrf.mxu0
      %v977 = vadd.f32 %v434, %v976
      %978 = vmatmul.f32.gmra.mxu0 %v675
      %v979 = vpop.f32.mrf.mxu0
      %v980 = vadd.f32 %v434, %v979
      %981 = vmatmul.f32.gmra.mxu0 %v678
      %v982 = vpop.f32.mrf.mxu0
      %v983 = vadd.f32 %v434, %v982
      %984 = vmatmul.f32.gmra.mxu0 %v681
      %v985 = vpop.f32.mrf.mxu0
      %v986 = vadd.f32 %v434, %v985
      %987 = vmatmul.f32.gmra.mxu0 %v684
      %v988 = vpop.f32.mrf.mxu0
      %v989 = vadd.f32 %v434, %v988
      %990 = vmatmul.f32.gmra.mxu0 %v687
      %v991 = vpop.f32.mrf.mxu0
      %v992 = vadd.f32 %v434, %v991
      %993 = vmatmul.f32.gmra.mxu0 %v690
      %v994 = vpop.f32.mrf.mxu0
      %v995 = vadd.f32 %v434, %v994
      %996 = vmatmul.f32.gmra.mxu0 %v693
      %v997 = vpop.f32.mrf.mxu0
      %v998 = vadd.f32 %v434, %v997
      %999 = vmatmul.f32.gmra.mxu0 %v696
      %v1000 = vpop.f32.mrf.mxu0
      %v1001 = vadd.f32 %v434, %v1000
      %1002 = vmatmul.f32.gmra.mxu0 %v699
      %v1003 = vpop.f32.mrf.mxu0
      %v1004 = vadd.f32 %v434, %v1003
      %1005 = vmatmul.f32.gmra.mxu0 %v702
      %v1006 = vpop.f32.mrf.mxu0
      %v1007 = vadd.f32 %v434, %v1006
      %1008 = vmatmul.f32.gmra.mxu0 %v705
      %v1009 = vpop.f32.mrf.mxu0
      %v1010 = vadd.f32 %v434, %v1009
      %1011 = vmatmul.f32.gmra.mxu0 %v708
      %v1012 = vpop.f32.mrf.mxu0
      %v1013 = vadd.f32 %v434, %v1012
      %1014 = vmatmul.f32.gmra.mxu0 %v711
      %v1015 = vpop.f32.mrf.mxu0
      %v1016 = vadd.f32 %v434, %v1015
      %1017 = vmatmul.f32.gmra.mxu0 %v714
      %v1018 = vpop.f32.mrf.mxu0
      %v1019 = vadd.f32 %v434, %v1018
      %1020 = vmatmul.f32.gmra.mxu0 %v717
      %v1021 = vpop.f32.mrf.mxu0
      %v1022 = vadd.f32 %v434, %v1021
      %1023 = vmatmul.f32.gmra.mxu0 %v720
      %v1024 = vpop.f32.mrf.mxu0
      %v1025 = vadd.f32 %v434, %v1024
      %1026 = vmatmul.f32.gmra.mxu0 %v723
      %v1027 = vpop.f32.mrf.mxu0
      %v1028 = vadd.f32 %v434, %v1027
      %1029 = vdwg.mxu0
      %v1030 = vtanh.pop %v743
      %v1031 = vtanh.pop %v746
      %v1032 = vtanh.pop %v749
      %v1033 = vtanh.pop %v752
      %v1034 = vtanh.pop %v755
      %v1035 = vtanh.pop %v758
      %v1036 = vtanh.pop %v761
      %v1037 = vtanh.pop %v764
      %v1038 = vtanh.pop %v767
      %v1039 = vtanh.pop %v770
      %v1040 = vtanh.pop %v773
      %v1041 = vtanh.pop %v776
      %v1042 = vtanh.pop %v779
      %v1043 = vtanh.pop %v782
      %v1044 = vtanh.pop %v785
      %v1045 = vtanh.pop %v788
      %v1046 = vtanh.pop %v791
      %v1047 = vtanh.pop %v794
      %v1048 = vtanh.pop %v797
      %v1049 = vtanh.pop %v800
      %v1050 = vtanh.pop %v803
      %v1051 = vtanh.pop %v806
      %v1052 = vtanh.pop %v809
      %v1053 = vtanh.pop %v812
      %v1054 = vtanh.pop %v815
      %v1055 = vtanh.pop %v818
      %v1056 = vtanh.pop %v821
      %v1057 = vtanh.pop %v824
      %v1058 = vtanh.pop %v827
      %v1059 = vtanh.pop %v830
      %v1060 = vtanh.pop %v833
      %v1061 = vtanh.pop %v836
      %v1062 = vtanh.pop %v839
      %v1063 = vtanh.pop %v842
      %v1064 = vtanh.pop %v845
      %v1065 = vtanh.pop %v848
      %v1066 = vtanh.pop %v851
      %v1067 = vtanh.pop %v854
      %v1068 = vtanh.pop %v857
      %v1069 = vtanh.pop %v860
      %v1070 = vtanh.pop %v863
      %v1071 = vtanh.pop %v866
      %v1072 = vtanh.pop %v869
      %v1073 = vtanh.pop %v872
      %v1074 = vtanh.pop %v875
      %v1075 = vtanh.pop %v878
      %v1076 = vtanh.pop %v881
      %v1077 = vtanh.pop %v884
      %v1078 = vtanh.pop %v887
      %v1079 = vtanh.pop %v890
      %v1080 = vtanh.pop %v893
      %v1081 = vtanh.pop %v896
      %v1082 = vtanh.pop %v899
      %v1083 = vtanh.pop %v902
      %v1084 = vtanh.pop %v905
      %v1085 = vtanh.pop %v908
      %v1086 = vtanh.pop %v911
      %v1087 = vtanh.pop %v914
      %v1088 = vtanh.pop %v917
      %v1089 = vtanh.pop %v920
      %v1090 = vtanh.pop %v923
      %v1091 = vtanh.pop %v926
      %v1092 = vtanh.pop %v929
      %v1093 = vtanh.pop %v932
      %v1094 = vtanh.pop %v935
      %v1095 = vtanh.pop %v938
      %v1096 = vtanh.pop %v941
      %v1097 = vtanh.pop %v944
      %v1098 = vtanh.pop %v947
      %v1099 = vtanh.pop %v950
      %v1100 = vtanh.pop %v953
      %v1101 = vtanh.pop %v956
      %v1102 = vtanh.pop %v959
      %v1103 = vtanh.pop %v962
      %v1104 = vtanh.pop %v965
      %v1105 = vtanh.pop %v968
      %v1106 = vtanh.pop %v971
      %v1107 = vtanh.pop %v974
      %v1108 = vtanh.pop %v977
      %v1109 = vtanh.pop %v980
      %v1110 = vtanh.pop %v983
      %v1111 = vtanh.pop %v986
      %v1112 = vtanh.pop %v989
      %v1113 = vtanh.pop %v992
      %v1114 = vtanh.pop %v995
      %v1115 = vtanh.pop %v998
      %v1116 = vtanh.pop %v1001
      %v1117 = vtanh.pop %v1004
      %v1118 = vtanh.pop %v1007
      %v1119 = vtanh.pop %v1010
      %v1120 = vtanh.pop %v1013
      %v1121 = vtanh.pop %v1016
      %v1122 = vtanh.pop %v1019
      %v1123 = vtanh.pop %v1022
      %v1124 = vtanh.pop %v1025
      %v1125 = vtanh.pop %v1028
      %v1126 = vld [vmem:[%s322] sm:$0x7]
      %v1127 = vadd.f32 %v1030, %v1031
      %v1128 = vadd.f32 %v1127, %v1032
      %v1129 = vadd.f32 %v1128, %v1033
      %v1130 = vadd.f32 %v1129, %v1034
      %v1131 = vadd.f32 %v1130, %v1035
      %v1132 = vadd.f32 %v1131, %v1036
      %v1133 = vadd.f32 %v1132, %v1037
      %v1134 = vadd.f32 %v1133, %v1038
      %v1135 = vadd.f32 %v1134, %v1039
      %v1136 = vadd.f32 %v1135, %v1040
      %v1137 = vadd.f32 %v1136, %v1041
      %v1138 = vadd.f32 %v1137, %v1042
      %v1139 = vadd.f32 %v1138, %v1043
      %v1140 = vadd.f32 %v1139, %v1044
      %v1141 = vadd.f32 %v1140, %v1045
      %v1142 = vadd.f32 %v1141, %v1046
      %v1143 = vadd.f32 %v1142, %v1047
      %v1144 = vadd.f32 %v1143, %v1048
      %v1145 = vadd.f32 %v1144, %v1049
      %v1146 = vadd.f32 %v1145, %v1050
      %v1147 = vadd.f32 %v1146, %v1051
      %v1148 = vadd.f32 %v1147, %v1052
      %v1149 = vadd.f32 %v1148, %v1053
      %v1150 = vadd.f32 %v1149, %v1054
      %v1151 = vadd.f32 %v1150, %v1055
      %v1152 = vadd.f32 %v1151, %v1056
      %v1153 = vadd.f32 %v1152, %v1057
      %v1154 = vadd.f32 %v1153, %v1058
      %v1155 = vadd.f32 %v1154, %v1059
      %v1156 = vadd.f32 %v1155, %v1060
      %v1157 = vadd.f32 %v1156, %v1061
      %v1158 = vrot.slane %v1157, 4
      %v1159 = vadd.f32 %v1157, %v1158
      %v1160 = vrot.slane %v1159, 2
      %v1161 = vadd.f32 %v1159, %v1160
      %v1162 = vrot.slane %v1161, 1
      %v1163 = vadd.f32 %v1161, %v1162
      %v1164 = vadd.f32 %v1062, %v1063
      %v1165 = vadd.f32 %v1164, %v1064
      %v1166 = vadd.f32 %v1165, %v1065
      %v1167 = vadd.f32 %v1166, %v1066
      %v1168 = vadd.f32 %v1167, %v1067
      %v1169 = vadd.f32 %v1168, %v1068
      %v1170 = vadd.f32 %v1169, %v1069
      %v1171 = vadd.f32 %v1170, %v1070
      %v1172 = vadd.f32 %v1171, %v1071
      %v1173 = vadd.f32 %v1172, %v1072
      %v1174 = vadd.f32 %v1173, %v1073
      %v1175 = vadd.f32 %v1174, %v1074
      %v1176 = vadd.f32 %v1175, %v1075
      %v1177 = vadd.f32 %v1176, %v1076
      %v1178 = vadd.f32 %v1177, %v1077
      %v1179 = vadd.f32 %v1178, %v1078
      %v1180 = vadd.f32 %v1179, %v1079
      %v1181 = vadd.f32 %v1180, %v1080
      %v1182 = vadd.f32 %v1181, %v1081
      %v1183 = vadd.f32 %v1182, %v1082
      %v1184 = vadd.f32 %v1183, %v1083
      %v1185 = vadd.f32 %v1184, %v1084
      %v1186 = vadd.f32 %v1185, %v1085
      %v1187 = vadd.f32 %v1186, %v1086
      %v1188 = vadd.f32 %v1187, %v1087
      %v1189 = vadd.f32 %v1188, %v1088
      %v1190 = vadd.f32 %v1189, %v1089
      %v1191 = vadd.f32 %v1190, %v1090
      %v1192 = vadd.f32 %v1191, %v1091
      %v1193 = vadd.f32 %v1192, %v1092
      %v1194 = vadd.f32 %v1193, %v1093
      %v1195 = vrot.slane %v1194, 4
      %v1196 = vadd.f32 %v1194, %v1195
      %v1197 = vrot.slane %v1196, 2
      %v1198 = vadd.f32 %v1196, %v1197
      %v1199 = vrot.slane %v1198, 1
      %v1200 = vadd.f32 %v1198, %v1199
      %v1201 = vadd.f32 %v1094, %v1095
      %v1202 = vadd.f32 %v1201, %v1096
      %v1203 = vadd.f32 %v1202, %v1097
      %v1204 = vadd.f32 %v1203, %v1098
      %v1205 = vadd.f32 %v1204, %v1099
      %v1206 = vadd.f32 %v1205, %v1100
      %v1207 = vadd.f32 %v1206, %v1101
      %v1208 = vadd.f32 %v1207, %v1102
      %v1209 = vadd.f32 %v1208, %v1103
      %v1210 = vadd.f32 %v1209, %v1104
      %v1211 = vadd.f32 %v1210, %v1105
      %v1212 = vadd.f32 %v1211, %v1106
      %v1213 = vadd.f32 %v1212, %v1107
      %v1214 = vadd.f32 %v1213, %v1108
      %v1215 = vadd.f32 %v1214, %v1109
      %v1216 = vadd.f32 %v1215, %v1110
      %v1217 = vadd.f32 %v1216, %v1111
      %v1218 = vadd.f32 %v1217, %v1112
      %v1219 = vadd.f32 %v1218, %v1113
      %v1220 = vadd.f32 %v1219, %v1114
      %v1221 = vadd.f32 %v1220, %v1115
      %v1222 = vadd.f32 %v1221, %v1116
      %v1223 = vadd.f32 %v1222, %v1117
      %v1224 = vadd.f32 %v1223, %v1118
      %v1225 = vadd.f32 %v1224, %v1119
      %v1226 = vadd.f32 %v1225, %v1120
      %v1227 = vadd.f32 %v1226, %v1121
      %v1228 = vadd.f32 %v1227, %v1122
      %v1229 = vadd.f32 %v1228, %v1123
      %v1230 = vadd.f32 %v1229, %v1124
      %v1231 = vadd.f32 %v1230, %v1125
      %v1232 = vrot.slane %v1231, 4
      %v1233 = vadd.f32 %v1231, %v1232
      %v1234 = vrot.slane %v1233, 2
      %v1235 = vadd.f32 %v1233, %v1234
      %v1236 = vrot.slane %v1235, 1
      %v1237 = vadd.f32 %v1235, %v1236
      %vm1241 = vcmask 1041409
      %v1242 = vsel %vm1241, %v1200, %v1163
      %vm1243 = vcmask 1042434
      %v1244 = vsel %vm1243, %v1237, %v1242
      %v1246 = vadd.f32 %v1126, %v1244
      %1247 = vst [vmem:[%s322] sm:$0x7] %v1246
      %p1248 = scmp.lt.s32.totalorder %s20, 1
      %s1249 = scalar_select %p1248, %s20, 1
      %s1250 = smul.addr %s1249, 4
      %s1251 = scalar_lea.vmem %s5, %s1250
      // Predicated region
      $region45: #{semantic_attention.2} parent=39 // pred_check
        %p1252 = pneg %p178
      $region46: #{semantic_attention.2} parent=39 // pred_check_branch
        %1254 = sbr.rel (%p1252) target = $region48
      $region47: #{semantic_attention.2} parent=39 // pred_region
        _
      $region48: #{semantic_attention.2} parent=39 // pred_fallthru
        _
    $region40: #{semantic_attention.2} parent=5 // pred_fallthru
      _
    %p1255 = scmp.le.s32.totalorder 2, %s11
    // Predicated region
    $region49: #{semantic_attention.2} parent=5 // pred_check
      %p1256 = pneg %p1255
    $region50: #{semantic_attention.2} parent=5 // pred_check_branch
      %1258 = sbr.rel (%p1256) target = $region52
    $region51: #{semantic_attention.2} parent=5 // pred_region
      %s1259 = ssub.s32 %s11, 2
      // Predicated region
      $region53: #{semantic_attention.2} parent=51 // pred_check
        %p1260 = pneg %p184
      $region54: #{semantic_attention.2} parent=51 // pred_check_branch
        %1262 = sbr.rel (%p1260) target = $region56
      $region55: #{semantic_attention.2} parent=51 // pred_region
        %p1263 = scmp.lt.s32.totalorder %s22, 1
        %s1264 = scalar_select %p1263, %s22, 1
        %s1265 = smul.addr %s1264, 4
        %s1266 = scalar_lea.vmem %s5, %s1265
      $region56: #{semantic_attention.2} parent=51 // pred_fallthru
        _
    $region52: #{semantic_attention.2} parent=5 // pred_fallthru
      _
  $region6: #{semantic_attention.2} parent=0 // loop_footer
    %s15 = sadd.s32 1, %s11
  $region7: #{semantic_attention.2} parent=0 // loop_footer_branch
    %10 = sbr.rel target = $region3
  $region8: #{semantic_attention.2} parent=0 // loop_exit
    _

</llo_original>
